<compile_context>
chip_gen: v5e
topology: v5e:2x2
jax: 0.10.0
libtpu: 0.0.40
codegen_flags: <defaults>
</compile_context>

<pallas_src>
import jax
import jax.numpy as jnp
from jax.experimental import pallas as pl
from jax.experimental.pallas import tpu as pltpu

EPS = 1e-5
PAD = 1   # conv padding (module default)
KH = 3
KW = 3


def brc_kernel(xa_ref, xb_ref, scale_ref, shift_ref, w_ref, b_ref, o_ref, patch_ref):
    # xa_ref:    (1, TH, Wp, Cin)   main rows of the zero-padded NHWC input
    # xb_ref:    (1, 2,  Wp, Cin)   2-row bottom halo (same array, shifted BlockSpec)
    # scale_ref: (1, Cin)           folded BN scale  = gamma / sqrt(var + eps)
    # shift_ref: (1, Cin)           folded BN shift  = beta - mean * scale
    # w_ref:     (KH*KW*Cin, Cout)  im2col conv weight
    # b_ref:     (Cout, 1)          conv bias (column -> broadcasts over lanes)
    # o_ref:     (1, 1, Cout, TH*W) transposed, lane-dense output block
    # patch_ref: (TH*W, KH*KW*Cin)  VMEM staging buffer for the im2col patch
    _, TH, Wp, Cin = xa_ref.shape
    W = Wp - 2
    Cout = o_ref.shape[2]

    t = pl.program_id(1)
    H = pl.num_programs(1) * TH          # global (unpadded) height

    # TH + 2 halo'd rows of the padded input.
    slab = jnp.concatenate([xa_ref[0], xb_ref[0]], axis=0)          # (TH+2, Wp, Cin)

    # Folded BatchNorm (stats precomputed in the wrapper) + ReLU.
    act = jnp.maximum(
        slab * scale_ref[...].reshape(1, 1, Cin)
        + shift_ref[...].reshape(1, 1, Cin),
        0.0)

    # Zero exactly the positions that correspond to the conv's zero padding
    # (padded row 0 / H+1, padded col 0 / W+1).  Raw zero-pad went through BN,
    # so it must be masked back to zero to match F.conv2d semantics.
    row_g = t * TH + jax.lax.broadcasted_iota(jnp.int32, (TH + 2, Wp, Cin), 0)
    col_g = jax.lax.broadcasted_iota(jnp.int32, (TH + 2, Wp, Cin), 1)
    valid = (row_g >= 1) & (row_g <= H) & (col_g >= 1) & (col_g <= W)
    act = jnp.where(valid, act, 0.0)

    # im2col staging: fold the 3x3 taps into the contraction axis once.
    for kh in range(KH):
        for kw in range(KW):
            idx = kh * KW + kw
            patch_ref[:, idx * Cin:(idx + 1) * Cin] = (
                act[kh:kh + TH, kw:kw + W, :].reshape(TH * W, Cin))

    # One fat MXU matmul: (TH*W, 9*Cin) x (9*Cin, Cout), f32 accumulate.
    res = jnp.dot(patch_ref[...], w_ref[...],
                  preferred_element_type=jnp.float32)                # (TH*W, Cout)

    # Transpose so the store is lane-dense (TH*W on the lane axis), add bias.
    out_t = res.T + b_ref[...]                                       # (Cout, TH*W)
    o_ref[...] = out_t.reshape(1, 1, Cout, TH * W).astype(o_ref.dtype)


def brc_forward(x_nchw, gamma, beta, weight, bias):
    """x_nchw: (N, Cin, H, W) f32; weight: (Cout, Cin, KH, KW) as in PyTorch."""
    N, Cin, H, W = x_nchw.shape
    Cout, _, kh_, kw_ = weight.shape
    assert kh_ == KH and kw_ == KW, "kernel implements the module default 3x3 conv"
    assert H % 8 == 0, "row tiling assumes H divisible by 8"

    x = x_nchw.astype(jnp.float32)

    # BatchNorm2d training-mode statistics, one pass: biased var = E[x^2] - E[x]^2.
    mean = jnp.mean(x, axis=(0, 2, 3))
    var = jnp.maximum(jnp.mean(jnp.square(x), axis=(0, 2, 3)) - mean * mean, 0.0)
    scale = gamma.astype(jnp.float32) * jax.lax.rsqrt(var + EPS)
    shift = beta.astype(jnp.float32) - mean * scale

    # Row tile: multiple of 8 sublanes, ~>=128 matmul rows per step.
    TH = 8
    while (TH * 2) <= H and H % (TH * 2) == 0 and (TH * W) < 128:
        TH *= 2
    NT = H // TH
    Wp = W + 2 * PAD

    # NCHW -> NHWC, zero-pad spatially.  Bottom is padded to a multiple of TH so
    # every BlockSpec block stays in bounds and divides the padded row dim.
    x_nhwc = jnp.transpose(x, (0, 2, 3, 1))
    x_pad = jnp.pad(x_nhwc, ((0, 0), (PAD, TH - PAD), (PAD, PAD), (0, 0)))

    # OIHW -> (KH, KW, Cin, Cout) -> (KH*KW*Cin, Cout): matches the kernel's
    # (kh, kw, cin) im2col ordering.
    w2 = jnp.transpose(weight.astype(jnp.float32), (2, 3, 1, 0)).reshape(
        KH * KW * Cin, Cout)
    scale2 = scale.reshape(1, Cin)
    shift2 = shift.reshape(1, Cin)
    bias2 = bias.astype(jnp.float32).reshape(Cout, 1)

    out_t = pl.pallas_call(
        brc_kernel,
        out_shape=jax.ShapeDtypeStruct((N, NT, Cout, TH * W), jnp.float32),
        grid=(N, NT),
        in_specs=[
            # main TH rows of the padded input
            pl.BlockSpec((1, TH, Wp, Cin), lambda n, t: (n, t, 0, 0)),
            # 2-row bottom halo (same padded array, offset by TH rows)
            pl.BlockSpec((1, 2, Wp, Cin),
                         lambda n, t: (n, (t + 1) * (TH // 2), 0, 0)),
            pl.BlockSpec((1, Cin), lambda n, t: (0, 0)),
            pl.BlockSpec((1, Cin), lambda n, t: (0, 0)),
            pl.BlockSpec((KH * KW * Cin, Cout), lambda n, t: (0, 0)),
            pl.BlockSpec((Cout, 1), lambda n, t: (0, 0)),
        ],
        out_specs=pl.BlockSpec((1, 1, Cout, TH * W), lambda n, t: (n, t, 0, 0)),
        scratch_shapes=[pltpu.VMEM((TH * W, KH * KW * Cin), jnp.float32)],
        compiler_params=pltpu.CompilerParams(
            dimension_semantics=("parallel", "parallel"),
            # explicit, conservative budget (fits v5e/v6e/v7x scoped VMEM)
            vmem_limit_bytes=32 * 1024 * 1024),
    )(x_pad, x_pad, scale2, shift2, w2, bias2)

    # (N, NT, Cout, TH*W) -> (N, Cout, H, W)
    out = out_t.reshape(N, NT, Cout, TH, W)
    out = jnp.transpose(out, (0, 2, 1, 3, 4)).reshape(N, Cout, H, W)
    return out


def brc_reference(x_nchw, gamma, beta, weight, bias):
    """Pure-JAX reference with identical semantics (NCHW)."""
    mean = jnp.mean(x_nchw, axis=(0, 2, 3), keepdims=True)
    var = jnp.mean(jnp.square(x_nchw - mean), axis=(0, 2, 3), keepdims=True)
    xhat = (x_nchw - mean) / jnp.sqrt(var + EPS)
    act = jnp.maximum(xhat * gamma[None, :, None, None] + beta[None, :, None, None], 0.0)
    out = jax.lax.conv_general_dilated(
        act, weight, window_strides=(1, 1), padding=((PAD, PAD), (PAD, PAD)),
        dimension_numbers=("NCHW", "OIHW", "NCHW"))
    return out + bias[None, :, None, None]


if __name__ == "__main__":
    # Small shapes consistent with the module: N=2, Cin=4, H=W=16, Cout=8, 3x3 conv.
    N, Cin, Cout, H, W, K = 2, 4, 8, 16, 16, 3

    key = jax.random.PRNGKey(0)
    kx, kg, kb, kw, kc = jax.random.split(key, 5)

    x = jax.random.normal(kx, (N, Cin, H, W), dtype=jnp.float32)
    gamma = 1.0 + 0.1 * jax.random.normal(kg, (Cin,), dtype=jnp.float32)
    beta = 0.1 * jax.random.normal(kb, (Cin,), dtype=jnp.float32)
    weight = 0.1 * jax.random.normal(kw, (Cout, Cin, K, K), dtype=jnp.float32)
    bias = 0.1 * jax.random.normal(kc, (Cout,), dtype=jnp.float32)

    out = jax.block_until_ready(brc_forward(x, gamma, beta, weight, bias))
    ref = jax.block_until_ready(brc_reference(x, gamma, beta, weight, bias))

    assert out.shape == (N, Cout, H, W), out.shape
    assert jnp.allclose(out, ref, atol=1e-3, rtol=1e-3), float(jnp.max(jnp.abs(out - ref)))
    print("KERNEL_OK")
</pallas_src>

<mosaic_0001>
module attributes {stable_mosaic.version = 11 : i64} {
  func.func @brc_kernel(%arg0: i32, %arg1: i32, %arg2: memref<1x8x18x4xf32, #tpu.memory_space<vmem>>, %arg3: memref<1x2x18x4xf32, #tpu.memory_space<vmem>>, %arg4: memref<1x4xf32, #tpu.memory_space<vmem>>, %arg5: memref<1x4xf32, #tpu.memory_space<vmem>>, %arg6: memref<36x8xf32, #tpu.memory_space<vmem>>, %arg7: memref<8x1xf32, #tpu.memory_space<vmem>>, %arg8: memref<1x1x8x128xf32, #tpu.memory_space<vmem>>, %arg9: memref<128x36xf32, #tpu.memory_space<vmem>>) attributes {dimension_semantics = [#tpu.dimension_semantics<parallel>, #tpu.dimension_semantics<parallel>], iteration_bounds = array<i64: 2, 2>, scalar_prefetch = 0 : i64, scratch_operands = 1 : i64, tpu.core_type = #tpu.core_type<tc>, window_params = [{transform_indices = @transform_0, window_bounds = array<i64: 1, 8, 18, 4>}, {transform_indices = @transform_1, window_bounds = array<i64: 1, 2, 18, 4>}, {pipeline_mode = #tpu.pipeline_mode<synchronous>, transform_indices = @transform_2, window_bounds = array<i64: 1, 4>}, {pipeline_mode = #tpu.pipeline_mode<synchronous>, transform_indices = @transform_3, window_bounds = array<i64: 1, 4>}, {pipeline_mode = #tpu.pipeline_mode<synchronous>, transform_indices = @transform_4, window_bounds = array<i64: 36, 8>}, {pipeline_mode = #tpu.pipeline_mode<synchronous>, transform_indices = @transform_5, window_bounds = array<i64: 8, 1>}, {transform_indices = @transform_6, window_bounds = array<i64: 1, 1, 8, 128>}]} {
    %c0 = arith.constant 0 : index
    %c0_0 = arith.constant 0 : index
    %c0_1 = arith.constant 0 : index
    %c0_2 = arith.constant 0 : index
    %0 = vector.load %arg2[%c0, %c0_0, %c0_1, %c0_2] : memref<1x8x18x4xf32, #tpu.memory_space<vmem>>, vector<1x8x18x4xf32>
    %1 = vector.shape_cast %0 : vector<1x8x18x4xf32> to vector<8x18x4xf32>
    %c0_3 = arith.constant 0 : index
    %c0_4 = arith.constant 0 : index
    %c0_5 = arith.constant 0 : index
    %c0_6 = arith.constant 0 : index
    %2 = vector.load %arg3[%c0_3, %c0_4, %c0_5, %c0_6] : memref<1x2x18x4xf32, #tpu.memory_space<vmem>>, vector<1x2x18x4xf32>
    %3 = vector.shape_cast %2 : vector<1x2x18x4xf32> to vector<2x18x4xf32>
    %4 = tpu.concatenate %1, %3 in 0 : vector<8x18x4xf32>, vector<2x18x4xf32> -> vector<10x18x4xf32>
    %c0_7 = arith.constant 0 : index
    %c0_8 = arith.constant 0 : index
    %5 = vector.load %arg4[%c0_7, %c0_8] : memref<1x4xf32, #tpu.memory_space<vmem>>, vector<1x4xf32>
    %6 = vector.shape_cast %5 : vector<1x4xf32> to vector<1x1x4xf32>
    %7 = vector.broadcast %6 : vector<1x1x4xf32> to vector<10x18x4xf32>
    %8 = arith.mulf %4, %7 : vector<10x18x4xf32>
    %c0_9 = arith.constant 0 : index
    %c0_10 = arith.constant 0 : index
    %9 = vector.load %arg5[%c0_9, %c0_10] : memref<1x4xf32, #tpu.memory_space<vmem>>, vector<1x4xf32>
    %10 = vector.shape_cast %9 : vector<1x4xf32> to vector<1x1x4xf32>
    %11 = vector.broadcast %10 : vector<1x1x4xf32> to vector<10x18x4xf32>
    %12 = arith.addf %8, %11 : vector<10x18x4xf32>
    %cst = arith.constant 0.000000e+00 : f32
    %13 = vector.broadcast %cst : f32 to vector<10x18x4xf32>
    %14 = arith.maximumf %12, %13 : vector<10x18x4xf32>
    %c8_i32 = arith.constant 8 : i32
    %15 = arith.muli %arg1, %c8_i32 : i32
    %16 = tpu.iota {dimensions = array<i32: 0>} : vector<10x18x4xi32>
    %17 = vector.broadcast %15 : i32 to vector<10x18x4xi32>
    %18 = arith.addi %17, %16 : vector<10x18x4xi32>
    %19 = tpu.iota {dimensions = array<i32: 1>} : vector<10x18x4xi32>
    %c1_i32 = arith.constant 1 : i32
    %20 = vector.broadcast %c1_i32 : i32 to vector<10x18x4xi32>
    %21 = arith.cmpi sge, %18, %20 : vector<10x18x4xi32>
    %c16_i32 = arith.constant 16 : i32
    %22 = vector.broadcast %c16_i32 : i32 to vector<10x18x4xi32>
    %23 = arith.cmpi sle, %18, %22 : vector<10x18x4xi32>
    %24 = arith.andi %21, %23 : vector<10x18x4xi1>
    %c1_i32_11 = arith.constant 1 : i32
    %25 = vector.broadcast %c1_i32_11 : i32 to vector<10x18x4xi32>
    %26 = arith.cmpi sge, %19, %25 : vector<10x18x4xi32>
    %27 = arith.andi %24, %26 : vector<10x18x4xi1>
    %c16_i32_12 = arith.constant 16 : i32
    %28 = vector.broadcast %c16_i32_12 : i32 to vector<10x18x4xi32>
    %29 = arith.cmpi sle, %19, %28 : vector<10x18x4xi32>
    %30 = arith.andi %27, %29 : vector<10x18x4xi1>
    %cst_13 = arith.constant 0.000000e+00 : f32
    %31 = vector.broadcast %cst_13 : f32 to vector<10x18x4xf32>
    %32 = arith.select %30, %14, %31 : vector<10x18x4xi1>, vector<10x18x4xf32>
    %33 = vector.extract_strided_slice %32 {offsets = [0, 0, 0], sizes = [8, 16, 4], strides = [1, 1, 1]} : vector<10x18x4xf32> to vector<8x16x4xf32>
    %34 = vector.shape_cast %33 : vector<8x16x4xf32> to vector<128x4xf32>
    %c0_14 = arith.constant 0 : index
    %c0_15 = arith.constant 0 : index
    %35 = vector.load %arg9[%c0_14, %c0_15] : memref<128x36xf32, #tpu.memory_space<vmem>>, vector<128x4xf32>
    tpu.vector_store %arg9[%c0_14, %c0_15], %34 {strides = array<i32>} : memref<128x36xf32, #tpu.memory_space<vmem>>, vector<128x4xf32>,
    %36 = vector.extract_strided_slice %32 {offsets = [0, 1, 0], sizes = [8, 16, 4], strides = [1, 1, 1]} : vector<10x18x4xf32> to vector<8x16x4xf32>
    %37 = vector.shape_cast %36 : vector<8x16x4xf32> to vector<128x4xf32>
    %c0_16 = arith.constant 0 : index
    %c4 = arith.constant 4 : index
    %38 = vector.load %arg9[%c0_16, %c4] : memref<128x36xf32, #tpu.memory_space<vmem>>, vector<128x4xf32>
    tpu.vector_store %arg9[%c0_16, %c4], %37 {strides = array<i32>} : memref<128x36xf32, #tpu.memory_space<vmem>>, vector<128x4xf32>,
    %39 = vector.extract_strided_slice %32 {offsets = [0, 2, 0], sizes = [8, 16, 4], strides = [1, 1, 1]} : vector<10x18x4xf32> to vector<8x16x4xf32>
    %40 = vector.shape_cast %39 : vector<8x16x4xf32> to vector<128x4xf32>
    %c0_17 = arith.constant 0 : index
    %c8 = arith.constant 8 : index
    %41 = vector.load %arg9[%c0_17, %c8] : memref<128x36xf32, #tpu.memory_space<vmem>>, vector<128x4xf32>
    tpu.vector_store %arg9[%c0_17, %c8], %40 {strides = array<i32>} : memref<128x36xf32, #tpu.memory_space<vmem>>, vector<128x4xf32>,
    %42 = vector.extract_strided_slice %32 {offsets = [1, 0, 0], sizes = [8, 16, 4], strides = [1, 1, 1]} : vector<10x18x4xf32> to vector<8x16x4xf32>
    %43 = vector.shape_cast %42 : vector<8x16x4xf32> to vector<128x4xf32>
    %c0_18 = arith.constant 0 : index
    %c12 = arith.constant 12 : index
    %44 = vector.load %arg9[%c0_18, %c12] : memref<128x36xf32, #tpu.memory_space<vmem>>, vector<128x4xf32>
    tpu.vector_store %arg9[%c0_18, %c12], %43 {strides = array<i32>} : memref<128x36xf32, #tpu.memory_space<vmem>>, vector<128x4xf32>,
    %45 = vector.extract_strided_slice %32 {offsets = [1, 1, 0], sizes = [8, 16, 4], strides = [1, 1, 1]} : vector<10x18x4xf32> to vector<8x16x4xf32>
    %46 = vector.shape_cast %45 : vector<8x16x4xf32> to vector<128x4xf32>
    %c0_19 = arith.constant 0 : index
    %c16 = arith.constant 16 : index
    %47 = vector.load %arg9[%c0_19, %c16] : memref<128x36xf32, #tpu.memory_space<vmem>>, vector<128x4xf32>
    tpu.vector_store %arg9[%c0_19, %c16], %46 {strides = array<i32>} : memref<128x36xf32, #tpu.memory_space<vmem>>, vector<128x4xf32>,
    %48 = vector.extract_strided_slice %32 {offsets = [1, 2, 0], sizes = [8, 16, 4], strides = [1, 1, 1]} : vector<10x18x4xf32> to vector<8x16x4xf32>
    %49 = vector.shape_cast %48 : vector<8x16x4xf32> to vector<128x4xf32>
    %c0_20 = arith.constant 0 : index
    %c20 = arith.constant 20 : index
    %50 = vector.load %arg9[%c0_20, %c20] : memref<128x36xf32, #tpu.memory_space<vmem>>, vector<128x4xf32>
    tpu.vector_store %arg9[%c0_20, %c20], %49 {strides = array<i32>} : memref<128x36xf32, #tpu.memory_space<vmem>>, vector<128x4xf32>,
    %51 = vector.extract_strided_slice %32 {offsets = [2, 0, 0], sizes = [8, 16, 4], strides = [1, 1, 1]} : vector<10x18x4xf32> to vector<8x16x4xf32>
    %52 = vector.shape_cast %51 : vector<8x16x4xf32> to vector<128x4xf32>
    %c0_21 = arith.constant 0 : index
    %c24 = arith.constant 24 : index
    %53 = vector.load %arg9[%c0_21, %c24] : memref<128x36xf32, #tpu.memory_space<vmem>>, vector<128x4xf32>
    tpu.vector_store %arg9[%c0_21, %c24], %52 {strides = array<i32>} : memref<128x36xf32, #tpu.memory_space<vmem>>, vector<128x4xf32>,
    %54 = vector.extract_strided_slice %32 {offsets = [2, 1, 0], sizes = [8, 16, 4], strides = [1, 1, 1]} : vector<10x18x4xf32> to vector<8x16x4xf32>
    %55 = vector.shape_cast %54 : vector<8x16x4xf32> to vector<128x4xf32>
    %c0_22 = arith.constant 0 : index
    %c28 = arith.constant 28 : index
    %56 = vector.load %arg9[%c0_22, %c28] : memref<128x36xf32, #tpu.memory_space<vmem>>, vector<128x4xf32>
    tpu.vector_store %arg9[%c0_22, %c28], %55 {strides = array<i32>} : memref<128x36xf32, #tpu.memory_space<vmem>>, vector<128x4xf32>,
    %57 = vector.extract_strided_slice %32 {offsets = [2, 2, 0], sizes = [8, 16, 4], strides = [1, 1, 1]} : vector<10x18x4xf32> to vector<8x16x4xf32>
    %58 = vector.shape_cast %57 : vector<8x16x4xf32> to vector<128x4xf32>
    %c0_23 = arith.constant 0 : index
    %c32 = arith.constant 32 : index
    %59 = vector.load %arg9[%c0_23, %c32] : memref<128x36xf32, #tpu.memory_space<vmem>>, vector<128x4xf32>
    tpu.vector_store %arg9[%c0_23, %c32], %58 {strides = array<i32>} : memref<128x36xf32, #tpu.memory_space<vmem>>, vector<128x4xf32>,
    %c0_24 = arith.constant 0 : index
    %c0_25 = arith.constant 0 : index
    %60 = vector.load %arg9[%c0_24, %c0_25] : memref<128x36xf32, #tpu.memory_space<vmem>>, vector<128x36xf32>
    %c0_26 = arith.constant 0 : index
    %c0_27 = arith.constant 0 : index
    %61 = vector.load %arg6[%c0_26, %c0_27] : memref<36x8xf32, #tpu.memory_space<vmem>>, vector<36x8xf32>
    %cst_28 = arith.constant dense<0.000000e+00> : vector<128x8xf32>
    %62 = tpu.matmul %60, %61, %cst_28 {dimension_numbers = #tpu.dot_dimension_numbers<[1], [0], [0], [1], [0, 0, 1, 1], [], []>} : vector<128x36xf32>, vector<36x8xf32>, vector<128x8xf32> -> vector<128x8xf32>
    %63 = tpu.transpose %62, [1, 0] : vector<128x8xf32> -> vector<8x128xf32>
    %c0_29 = arith.constant 0 : index
    %c0_30 = arith.constant 0 : index
    %64 = vector.load %arg7[%c0_29, %c0_30] : memref<8x1xf32, #tpu.memory_space<vmem>>, vector<8x1xf32>
    %65 = vector.broadcast %64 : vector<8x1xf32> to vector<8x128xf32>
    %66 = arith.addf %63, %65 : vector<8x128xf32>
    %67 = vector.shape_cast %66 : vector<8x128xf32> to vector<1x1x8x128xf32>
    %c0_31 = arith.constant 0 : index
    %c0_32 = arith.constant 0 : index
    %c0_33 = arith.constant 0 : index
    %c0_34 = arith.constant 0 : index
    %68 = vector.load %arg8[%c0_31, %c0_32, %c0_33, %c0_34] : memref<1x1x8x128xf32, #tpu.memory_space<vmem>>, vector<1x1x8x128xf32>
    tpu.vector_store %arg8[%c0_31, %c0_32, %c0_33, %c0_34], %67 {strides = array<i32>} : memref<1x1x8x128xf32, #tpu.memory_space<vmem>>, vector<1x1x8x128xf32>,
    return
  }
  func.func @transform_0(%arg0: i32, %arg1: i32) -> (i32, i32, i32, i32) {
    %c0_i32 = arith.constant 0 : i32
    %c0_i32_0 = arith.constant 0 : i32
    %c0_i32_1 = arith.constant 0 : i32
    return %arg0, %arg1, %c0_i32, %c0_i32_0 : i32, i32, i32, i32
  }
  func.func @transform_1(%arg0: i32, %arg1: i32) -> (i32, i32, i32, i32) {
    %c1_i32 = arith.constant 1 : i32
    %0 = arith.addi %arg1, %c1_i32 : i32
    %c4_i32 = arith.constant 4 : i32
    %1 = arith.muli %0, %c4_i32 : i32
    %c0_i32 = arith.constant 0 : i32
    %c0_i32_0 = arith.constant 0 : i32
    %c0_i32_1 = arith.constant 0 : i32
    return %arg0, %1, %c0_i32, %c0_i32_0 : i32, i32, i32, i32
  }
  func.func @transform_2(%arg0: i32, %arg1: i32) -> (i32, i32) {
    %c0_i32 = arith.constant 0 : i32
    %c0_i32_0 = arith.constant 0 : i32
    %c0_i32_1 = arith.constant 0 : i32
    return %c0_i32, %c0_i32_0 : i32, i32
  }
  func.func @transform_3(%arg0: i32, %arg1: i32) -> (i32, i32) {
    %c0_i32 = arith.constant 0 : i32
    %c0_i32_0 = arith.constant 0 : i32
    %c0_i32_1 = arith.constant 0 : i32
    return %c0_i32, %c0_i32_0 : i32, i32
  }
  func.func @transform_4(%arg0: i32, %arg1: i32) -> (i32, i32) {
    %c0_i32 = arith.constant 0 : i32
    %c0_i32_0 = arith.constant 0 : i32
    %c0_i32_1 = arith.constant 0 : i32
    return %c0_i32, %c0_i32_0 : i32, i32
  }
  func.func @transform_5(%arg0: i32, %arg1: i32) -> (i32, i32) {
    %c0_i32 = arith.constant 0 : i32
    %c0_i32_0 = arith.constant 0 : i32
    %c0_i32_1 = arith.constant 0 : i32
    return %c0_i32, %c0_i32_0 : i32, i32
  }
  func.func @transform_6(%arg0: i32, %arg1: i32) -> (i32, i32, i32, i32) {
    %c0_i32 = arith.constant 0 : i32
    %c0_i32_0 = arith.constant 0 : i32
    %c0_i32_1 = arith.constant 0 : i32
    return %arg0, %arg1, %c0_i32, %c0_i32_0 : i32, i32, i32, i32
  }
}

</mosaic_0001>

<llo_original>
// kernel: tpu_custom_call.1
$region0: #{tpu_custom_call.1}
  #allocation0 [shape = 'u32[]', space=smem, size = 0x4, offset = 0x4, fixed_abs, tag = 'smem constant byte address 0x4 - core index']
  #allocation1 [shape = 'u32[72,128]{1,0:T(1,128)}', space=vmem, size = 0x9000, scoped, tag = 'internal scratch']
  #allocation2 [shape = 'f32[128,36]{1,0:T(8,128)}', space=vmem, size = 0x10000, scoped, tag = 'scratch operand']
  %s0 = inlined_call_operand.vmem [shape: f32[2,24,18,4], index: 0, kind: input, shape index: {}]
  %s1 = inlined_call_operand.vmem [shape: f32[2,24,18,4], index: 1, kind: input, shape index: {}]
  %s2 = inlined_call_operand.vmem [shape: f32[1,4], index: 2, kind: input, shape index: {}]
  %s3 = inlined_call_operand.vmem [shape: f32[1,4], index: 3, kind: input, shape index: {}]
  %s4 = inlined_call_operand.vmem [shape: f32[36,8], index: 4, kind: input, shape index: {}]
  %s5 = inlined_call_operand.vmem [shape: f32[8,1], index: 5, kind: input, shape index: {}]
  %s6 = inlined_call_operand.hbm [shape: f32[2,2,8,128], index: 6, kind: output, shape index: {}]
  %s7 = sld [smem:[#allocation0]]
  $region57: #{tpu_custom_call.1} parent=0
    _
  %s9 = ssub.s32 1, %s7
  %s10 = scalar_select 0, %s9, %s7
  $region1: #{tpu_custom_call.1} parent=0
    #allocation3 [shape = 'u8[8192]{0}', space=vmem, size = 0x2000, scoped, tag = 'output window, operand 0']
    #allocation4 [shape = 's32[2]{0}', space=sflag, size = 0x8, scoped, tag = 'scoped memory for tpu_custom_call.1']
    %11 = vsyncpa [#allocation4], 0
    %s12 = scalar_lea.sflag [#allocation4], 1
    %13 = vsyncpa %s12, 0
    loop: start=0, step=1, limit=6
    $region2: #{tpu_custom_call.1} parent=1 // loop_pre_header
      _
    $region3: #{tpu_custom_call.1} parent=1 // loop_header
      %s15 = sphi 0, %s19
      %p16 = scmp.ge.s32.totalorder %s15, 6
      %s22 = sphi 0, %s34
      %s23 = sphi 0, %s30
      %s24 = sphi 0, %s22
      %s25 = sphi 0, %s23
      %s26 = sphi 0, %s24
      %s27 = sphi 0, %s25
      %s39 = sphi 0, %s41
      %s42 = sphi 0, %s39
      %s43 = sphi 0, %s42
      %s59 = sphi 0, %s43
      %s71 = sphi 0, %s73
      %s74 = sphi 0, %s71
      %s75 = sphi 0, %s74
      %s91 = sphi 0, %s75
      %s95 = sphi 0, %s95
      %s97 = sphi 0, %s95
      %s98 = sphi 0, %s97
      %s112 = sphi 0, %s98
      %s116 = sphi 0, %s116
      %s118 = sphi 0, %s116
      %s119 = sphi 0, %s118
      %s133 = sphi 0, %s119
      %s137 = sphi 0, %s137
      %s139 = sphi 0, %s137
      %s140 = sphi 0, %s139
      %s154 = sphi 0, %s140
      %s158 = sphi 0, %s158
      %s160 = sphi 0, %s158
      %s161 = sphi 0, %s160
      %s175 = sphi 0, %s161
      %s183 = sphi 0, %s185
      %s186 = sphi 0, %s183
      %s187 = sphi 0, %s186
      %s203 = sphi 0, %s187
    $region4: #{tpu_custom_call.1} parent=1 // loop_header_branch
      %18 = sbr.rel (%p16) target = $region8
    $region5: #{tpu_custom_call.1} parent=1 // loop_body
      %s20 = ssub.s32 %s15, 1
      %s21 = ssub.s32 %s15, 2
      %s28 = sadd.s32 1, %s23
      %p29 = scmp.ge.s32.totalorder %s28, 2
      %s30 = scalar_select %p29, 0, %s28
      %s31 = sadd.s32 1, %s22
      %s32 = scalar_select %p29, %s31, %s22
      %p33 = scmp.ge.s32.totalorder %s32, 2
      %s34 = scalar_select %p33, 0, %s32
      %s35 = ssub.s32 %s22, %s34
      %s36 = ssub.s32 %s23, %s30
      %s37 = sor.u32 %s35, %s36
      %p38 = scmp.eq.s32.totalorder %s37, 0
      %s40 = sadd.s32 %s39, 1
      %s41 = scalar_select %p38, %s39, %s40
      %p44 = pneg %p38
      %p45 = scmp.eq.s32.totalorder %s15, 3
      %p46 = por %p44, %p45
      %p47 = scmp.ne.s32.totalorder %s39, %s42
      %p48 = scmp.eq.s32.totalorder %s15, 0
      %p49 = por %p47, %p48
      %p50 = scmp.ne.s32.totalorder %s39, %s42
      %p51 = scmp.eq.s32.totalorder %s20, 3
      %p52 = por %p50, %p51
      %p53 = scmp.ne.s32.totalorder %s42, %s43
      %p54 = scmp.eq.s32.totalorder %s20, 0
      %p55 = por %p53, %p54
      %p56 = scmp.ne.s32.totalorder %s42, %s43
      %p57 = scmp.eq.s32.totalorder %s21, 3
      %p58 = por %p56, %p57
      %p60 = scmp.ne.s32.totalorder %s43, %s59
      %p61 = scmp.eq.s32.totalorder %s21, 0
      %p62 = por %p60, %p61
      %s63 = sadd.s32 %s23, 1
      %s64 = smul.u32 %s63, 4
      %s65 = sadd.s32 %s30, 1
      %s66 = smul.u32 %s65, 4
      %s67 = ssub.s32 %s22, %s34
      %s68 = ssub.s32 %s64, %s66
      %s69 = sor.u32 %s67, %s68
      %p70 = scmp.eq.s32.totalorder %s69, 0
      %s72 = sadd.s32 %s71, 1
      %s73 = scalar_select %p70, %s71, %s72
      %p76 = pneg %p70
      %p77 = scmp.eq.s32.totalorder %s15, 3
      %p78 = por %p76, %p77
      %p79 = scmp.ne.s32.totalorder %s71, %s74
      %p80 = scmp.eq.s32.totalorder %s15, 0
      %p81 = por %p79, %p80
      %p82 = scmp.ne.s32.totalorder %s71, %s74
      %p83 = scmp.eq.s32.totalorder %s20, 3
      %p84 = por %p82, %p83
      %p85 = scmp.ne.s32.totalorder %s74, %s75
      %p86 = scmp.eq.s32.totalorder %s20, 0
      %p87 = por %p85, %p86
      %p88 = scmp.ne.s32.totalorder %s74, %s75
      %p89 = scmp.eq.s32.totalorder %s21, 3
      %p90 = por %p88, %p89
      %p92 = scmp.ne.s32.totalorder %s75, %s91
      %p93 = scmp.eq.s32.totalorder %s21, 0
      %p94 = por %p92, %p93
      %s96 = sadd.s32 %s95, 1
      %p99 = scmp.eq.s32.totalorder %s15, 3
      %p100 = scmp.ne.s32.totalorder %s95, %s97
      %p101 = scmp.eq.s32.totalorder %s15, 0
      %p102 = por %p100, %p101
      %p103 = scmp.ne.s32.totalorder %s95, %s97
      %p104 = scmp.eq.s32.totalorder %s20, 3
      %p105 = por %p103, %p104
      %p106 = scmp.ne.s32.totalorder %s97, %s98
      %p107 = scmp.eq.s32.totalorder %s20, 0
      %p108 = por %p106, %p107
      %p109 = scmp.ne.s32.totalorder %s97, %s98
      %p110 = scmp.eq.s32.totalorder %s21, 3
      %p111 = por %p109, %p110
      %p113 = scmp.ne.s32.totalorder %s98, %s112
      %p114 = scmp.eq.s32.totalorder %s21, 0
      %p115 = por %p113, %p114
      %s117 = sadd.s32 %s116, 1
      %p120 = scmp.eq.s32.totalorder %s15, 3
      %p121 = scmp.ne.s32.totalorder %s116, %s118
      %p122 = scmp.eq.s32.totalorder %s15, 0
      %p123 = por %p121, %p122
      %p124 = scmp.ne.s32.totalorder %s116, %s118
      %p125 = scmp.eq.s32.totalorder %s20, 3
      %p126 = por %p124, %p125
      %p127 = scmp.ne.s32.totalorder %s118, %s119
      %p128 = scmp.eq.s32.totalorder %s20, 0
      %p129 = por %p127, %p128
      %p130 = scmp.ne.s32.totalorder %s118, %s119
      %p131 = scmp.eq.s32.totalorder %s21, 3
      %p132 = por %p130, %p131
      %p134 = scmp.ne.s32.totalorder %s119, %s133
      %p135 = scmp.eq.s32.totalorder %s21, 0
      %p136 = por %p134, %p135
      %s138 = sadd.s32 %s137, 1
      %p141 = scmp.eq.s32.totalorder %s15, 3
      %p142 = scmp.ne.s32.totalorder %s137, %s139
      %p143 = scmp.eq.s32.totalorder %s15, 0
      %p144 = por %p142, %p143
      %p145 = scmp.ne.s32.totalorder %s137, %s139
      %p146 = scmp.eq.s32.totalorder %s20, 3
      %p147 = por %p145, %p146
      %p148 = scmp.ne.s32.totalorder %s139, %s140
      %p149 = scmp.eq.s32.totalorder %s20, 0
      %p150 = por %p148, %p149
      %p151 = scmp.ne.s32.totalorder %s139, %s140
      %p152 = scmp.eq.s32.totalorder %s21, 3
      %p153 = por %p151, %p152
      %p155 = scmp.ne.s32.totalorder %s140, %s154
      %p156 = scmp.eq.s32.totalorder %s21, 0
      %p157 = por %p155, %p156
      %s159 = sadd.s32 %s158, 1
      %p162 = scmp.eq.s32.totalorder %s15, 3
      %p163 = scmp.ne.s32.totalorder %s158, %s160
      %p164 = scmp.eq.s32.totalorder %s15, 0
      %p165 = por %p163, %p164
      %p166 = scmp.ne.s32.totalorder %s158, %s160
      %p167 = scmp.eq.s32.totalorder %s20, 3
      %p168 = por %p166, %p167
      %p169 = scmp.ne.s32.totalorder %s160, %s161
      %p170 = scmp.eq.s32.totalorder %s20, 0
      %p171 = por %p169, %p170
      %p172 = scmp.ne.s32.totalorder %s160, %s161
      %p173 = scmp.eq.s32.totalorder %s21, 3
      %p174 = por %p172, %p173
      %p176 = scmp.ne.s32.totalorder %s161, %s175
      %p177 = scmp.eq.s32.totalorder %s21, 0
      %p178 = por %p176, %p177
      %s179 = ssub.s32 %s22, %s34
      %s180 = ssub.s32 %s23, %s30
      %s181 = sor.u32 %s179, %s180
      %p182 = scmp.eq.s32.totalorder %s181, 0
      %s184 = sadd.s32 %s183, 1
      %s185 = scalar_select %p182, %s183, %s184
      %p188 = pneg %p182
      %p189 = scmp.eq.s32.totalorder %s15, 3
      %p190 = por %p188, %p189
      %p191 = scmp.ne.s32.totalorder %s183, %s186
      %p192 = scmp.eq.s32.totalorder %s15, 0
      %p193 = por %p191, %p192
      %p194 = scmp.ne.s32.totalorder %s183, %s186
      %p195 = scmp.eq.s32.totalorder %s20, 3
      %p196 = por %p194, %p195
      %p197 = scmp.ne.s32.totalorder %s186, %s187
      %p198 = scmp.eq.s32.totalorder %s20, 0
      %p199 = por %p197, %p198
      %p200 = scmp.ne.s32.totalorder %s186, %s187
      %p201 = scmp.eq.s32.totalorder %s21, 3
      %p202 = por %p200, %p201
      %p204 = scmp.ne.s32.totalorder %s187, %s203
      %p205 = scmp.eq.s32.totalorder %s21, 0
      %p206 = por %p204, %p205
      %p207 = scmp.le.s32.totalorder 1, %s15
      %p208 = scmp.lt.s32.totalorder %s15, 5
      %p209 = pnand %p207, %p208
      %p210 = pneg %p209
      // Predicated region
      $region9: #{tpu_custom_call.1} parent=5 // pred_check
        _
      $region10: #{tpu_custom_call.1} parent=5 // pred_check_branch
        %212 = sbr.rel (%p209) target = $region12
      $region11: #{tpu_custom_call.1} parent=5 // pred_region
        %s213 = ssub.s32 %s15, 1
        // Predicated region
        $region13: #{tpu_custom_call.1} parent=11 // pred_check
          %p214 = pneg %p108
        $region14: #{tpu_custom_call.1} parent=11 // pred_check_branch
          %216 = sbr.rel (%p214) target = $region16
        $region15: #{tpu_custom_call.1} parent=11 // pred_region
          _
        $region16: #{tpu_custom_call.1} parent=11 // pred_fallthru
          _
        // Predicated region
        $region17: #{tpu_custom_call.1} parent=11 // pred_check
          %p217 = pneg %p129
        $region18: #{tpu_custom_call.1} parent=11 // pred_check_branch
          %219 = sbr.rel (%p217) target = $region20
        $region19: #{tpu_custom_call.1} parent=11 // pred_region
          _
        $region20: #{tpu_custom_call.1} parent=11 // pred_fallthru
          _
        // Predicated region
        $region21: #{tpu_custom_call.1} parent=11 // pred_check
          %p220 = pneg %p150
        $region22: #{tpu_custom_call.1} parent=11 // pred_check_branch
          %222 = sbr.rel (%p220) target = $region24
        $region23: #{tpu_custom_call.1} parent=11 // pred_region
          _
        $region24: #{tpu_custom_call.1} parent=11 // pred_fallthru
          _
        // Predicated region
        $region25: #{tpu_custom_call.1} parent=11 // pred_check
          %p223 = pneg %p171
        $region26: #{tpu_custom_call.1} parent=11 // pred_check_branch
          %225 = sbr.rel (%p223) target = $region28
        $region27: #{tpu_custom_call.1} parent=11 // pred_region
          _
        $region28: #{tpu_custom_call.1} parent=11 // pred_fallthru
          _
      $region12: #{tpu_custom_call.1} parent=5 // pred_fallthru
        _
      %p226 = scmp.lt.s32.totalorder %s15, 4
      // Predicated region
      $region29: #{tpu_custom_call.1} parent=5 // pred_check
        %p227 = pneg %p226
      $region30: #{tpu_custom_call.1} parent=5 // pred_check_branch
        %229 = sbr.rel (%p227) target = $region32
      $region31: #{tpu_custom_call.1} parent=5 // pred_region
        // Predicated region
        $region33: #{tpu_custom_call.1} parent=31 // pred_check
          %p230 = pneg %p49
        $region34: #{tpu_custom_call.1} parent=31 // pred_check_branch
          %232 = sbr.rel (%p230) target = $region36
        $region35: #{tpu_custom_call.1} parent=31 // pred_region
          %s233 = smul.u32 8, %s23
          %p234 = scmp.lt.s32.totalorder %s22, 1
          %s235 = scalar_select %p234, %s22, 1
          %p236 = scmp.lt.s32.totalorder %s233, 23
          %s237 = scalar_select %p236, %s233, 23
          %s238 = smul.addr %s237, 3
          %s239 = smul.addr %s235, 72
          %s240 = sadd.s32 %s238, %s239
          %s241 = smul.addr %s240, 8
          %s242 = scalar_lea.vmem %s0, %s241
          %s243 = smul.u32 8, %s23
        $region36: #{tpu_custom_call.1} parent=31 // pred_fallthru
          _
        // Predicated region
        $region37: #{tpu_custom_call.1} parent=31 // pred_check
          %p244 = pneg %p81
        $region38: #{tpu_custom_call.1} parent=31 // pred_check_branch
          %246 = sbr.rel (%p244) target = $region40
        $region39: #{tpu_custom_call.1} parent=31 // pred_region
          %s247 = sadd.s32 %s23, 1
          %s248 = smul.u32 %s247, 4
          %s249 = smul.u32 2, %s248
          %p250 = scmp.lt.s32.totalorder %s22, 1
          %s251 = scalar_select %p250, %s22, 1
          %p252 = scmp.lt.s32.totalorder %s249, 23
          %s253 = scalar_select %p252, %s249, 23
          %s254 = smul.addr %s253, 3
          %s255 = smul.addr %s251, 72
          %s256 = sadd.s32 %s254, %s255
          %s257 = smul.addr %s256, 8
          %s258 = scalar_lea.vmem %s1, %s257
          %s259 = sadd.s32 %s23, 1
          %s260 = smul.u32 %s259, 4
          %s261 = smul.u32 2, %s260
        $region40: #{tpu_custom_call.1} parent=31 // pred_fallthru
          _
      $region32: #{tpu_custom_call.1} parent=5 // pred_fallthru
        _
      %p262 = scmp.le.s32.totalorder 1, %s15
      %p263 = scmp.lt.s32.totalorder %s15, 5
      %p264 = pnand %p262, %p263
      %p265 = pneg %p264
      // Predicated region
      $region41: #{tpu_custom_call.1} parent=5 // pred_check
        _
      $region42: #{tpu_custom_call.1} parent=5 // pred_check_branch
        %267 = sbr.rel (%p264) target = $region44
      $region43: #{tpu_custom_call.1} parent=5 // pred_region
        %s268 = ssub.s32 %s15, 1
        %s269 = smul.u32 8, %s25
        %p270 = scmp.lt.s32.totalorder %s24, 1
        %s271 = scalar_select %p270, %s24, 1
        %p272 = scmp.lt.s32.totalorder %s269, 23
        %s273 = scalar_select %p272, %s269, 23
        %s274 = smul.addr %s273, 3
        %s275 = smul.addr %s271, 72
        %s276 = sadd.s32 %s274, %s275
        %s277 = smul.addr %s276, 8
        %s278 = scalar_lea.vmem %s0, %s277
        %p279 = pneg %p55
        %p280 = pneg %p52
        %s281 = sadd.s32 %s25, 1
        %s282 = smul.u32 %s281, 4
        %s283 = smul.u32 2, %s282
        %p284 = scmp.lt.s32.totalorder %s24, 1
        %s285 = scalar_select %p284, %s24, 1
        %p286 = scmp.lt.s32.totalorder %s283, 23
        %s287 = scalar_select %p286, %s283, 23
        %s288 = smul.addr %s287, 3
        %s289 = smul.addr %s285, 72
        %s290 = sadd.s32 %s288, %s289
        %s291 = smul.addr %s290, 8
        %s292 = scalar_lea.vmem %s1, %s291
        %p293 = pneg %p87
        %p294 = pneg %p84
        %p295 = pneg %p108
        %p296 = pneg %p105
        %p297 = pneg %p129
        %p298 = pneg %p126
        %p299 = pneg %p150
        %p300 = pneg %p147
        %p301 = pneg %p171
        %p302 = pneg %p168
        %p303 = pneg %p199
        %p304 = pneg %p196
        %s305 = sand.u32 %s186, 1
        %s306 = scalar_lea.sflag [#allocation4], %s305
        %s307 = sand.u32 %s186, 1
        %s308 = smul.addr %s307, 8
        %s309 = scalar_lea.vmem [#allocation3], %s308
        %s310 = smul.u32 8, %s25
        %p311 = scmp.lt.s32.totalorder %s24, 1
        %s312 = scalar_select %p311, %s24, 1
        %p313 = scmp.lt.s32.totalorder %s310, 23
        %s314 = scalar_select %p313, %s310, 23
        %s315 = smul.addr %s314, 3
        %s316 = smul.addr %s312, 72
        %s317 = sadd.s32 %s315, %s316
        %s318 = smul.addr %s317, 8
        %s319 = scalar_lea.vmem %s0, %s318
        %s320 = smul.u32 8, %s25
        %s321 = sadd.s32 %s25, 1
        %s322 = smul.u32 %s321, 4
        %s323 = smul.u32 2, %s322
        %p324 = scmp.lt.s32.totalorder %s24, 1
        %s325 = scalar_select %p324, %s24, 1
        %p326 = scmp.lt.s32.totalorder %s323, 23
        %s327 = scalar_select %p326, %s323, 23
        %s328 = smul.addr %s327, 3
        %s329 = smul.addr %s325, 72
        %s330 = sadd.s32 %s328, %s329
        %s331 = smul.addr %s330, 8
        %s332 = scalar_lea.vmem %s1, %s331
        %s333 = sadd.s32 %s25, 1
        %s334 = smul.u32 %s333, 4
        %s335 = smul.u32 2, %s334
        %v336 = vld [vmem:[%s319] sm:$0xff]
        %v337 = vld [vmem:[%s319 + $0x8] sm:$0xff]
        %v338 = vld [vmem:[%s319 + $0x10] sm:$0x3]
        %v339 = vld [vmem:[%s319 + $0x18] sm:$0xff]
        %v340 = vld [vmem:[%s319 + $0x20] sm:$0xff]
        %v341 = vld [vmem:[%s319 + $0x28] sm:$0x3]
        %v342 = vld [vmem:[%s319 + $0x30] sm:$0xff]
        %v343 = vld [vmem:[%s319 + $0x38] sm:$0xff]
        %v344 = vld [vmem:[%s319 + $0x40] sm:$0x3]
        %v345 = vld [vmem:[%s319 + $0x48] sm:$0xff]
        %v346 = vld [vmem:[%s319 + $0x50] sm:$0xff]
        %v347 = vld [vmem:[%s319 + $0x58] sm:$0x3]
        %v348 = vld [vmem:[%s319 + $0x60] sm:$0xff]
        %v349 = vld [vmem:[%s319 + $0x68] sm:$0xff]
        %v350 = vld [vmem:[%s319 + $0x70] sm:$0x3]
        %v351 = vld [vmem:[%s319 + $0x78] sm:$0xff]
        %v352 = vld [vmem:[%s319 + $0x80] sm:$0xff]
        %v353 = vld [vmem:[%s319 + $0x88] sm:$0x3]
        %v354 = vld [vmem:[%s319 + $0x90] sm:$0xff]
        %v355 = vld [vmem:[%s319 + $0x98] sm:$0xff]
        %v356 = vld [vmem:[%s319 + $0xa0] sm:$0x3]
        %v357 = vld [vmem:[%s319 + $0xa8] sm:$0xff]
        %v358 = vld [vmem:[%s319 + $0xb0] sm:$0xff]
        %v359 = vld [vmem:[%s319 + $0xb8] sm:$0x3]
        %v360 = vld [vmem:[%s332] sm:$0xff]
        %v361 = vld [vmem:[%s332 + $0x8] sm:$0xff]
        %v362 = vld [vmem:[%s332 + $0x10] sm:$0x3]
        %v363 = vld [vmem:[%s332 + $0x18] sm:$0xff]
        %v364 = vld [vmem:[%s332 + $0x20] sm:$0xff]
        %v365 = vld [vmem:[%s332 + $0x28] sm:$0x3]
        %v366 = vld [vmem:[%s2] sm:$0x1]
        %v368 = vperm.slane %v366, 0
        %v370 = vmul.f32 %v336, %v368
        %v371 = vmul.f32 %v337, %v368
        %v372 = vmul.f32 %v338, %v368
        %v373 = vmul.f32 %v339, %v368
        %v374 = vmul.f32 %v340, %v368
        %v375 = vmul.f32 %v341, %v368
        %v376 = vmul.f32 %v342, %v368
        %v377 = vmul.f32 %v343, %v368
        %v378 = vmul.f32 %v344, %v368
        %v379 = vmul.f32 %v345, %v368
        %v380 = vmul.f32 %v346, %v368
        %v381 = vmul.f32 %v347, %v368
        %v382 = vmul.f32 %v348, %v368
        %v383 = vmul.f32 %v349, %v368
        %v384 = vmul.f32 %v350, %v368
        %v385 = vmul.f32 %v351, %v368
        %v386 = vmul.f32 %v352, %v368
        %v387 = vmul.f32 %v353, %v368
        %v388 = vmul.f32 %v354, %v368
        %v389 = vmul.f32 %v355, %v368
        %v390 = vmul.f32 %v356, %v368
        %v391 = vmul.f32 %v357, %v368
        %v392 = vmul.f32 %v358, %v368
        %v393 = vmul.f32 %v359, %v368
        %v394 = vmul.f32 %v360, %v368
        %v395 = vmul.f32 %v361, %v368
        %v396 = vmul.f32 %v362, %v368
        %v397 = vmul.f32 %v363, %v368
        %v398 = vmul.f32 %v364, %v368
        %v399 = vmul.f32 %v365, %v368
        %v400 = vld [vmem:[%s3] sm:$0x1]
        %v402 = vperm.slane %v400, 0
        %v404 = vadd.f32 %v370, %v402
        %v405 = vadd.f32 %v371, %v402
        %v406 = vadd.f32 %v372, %v402
        %v407 = vadd.f32 %v373, %v402
        %v408 = vadd.f32 %v374, %v402
        %v409 = vadd.f32 %v375, %v402
        %v410 = vadd.f32 %v376, %v402
        %v411 = vadd.f32 %v377, %v402
        %v412 = vadd.f32 %v378, %v402
        %v413 = vadd.f32 %v379, %v402
        %v414 = vadd.f32 %v380, %v402
        %v415 = vadd.f32 %v381, %v402
        %v416 = vadd.f32 %v382, %v402
        %v417 = vadd.f32 %v383, %v402
        %v418 = vadd.f32 %v384, %v402
        %v419 = vadd.f32 %v385, %v402
        %v420 = vadd.f32 %v386, %v402
        %v421 = vadd.f32 %v387, %v402
        %v422 = vadd.f32 %v388, %v402
        %v423 = vadd.f32 %v389, %v402
        %v424 = vadd.f32 %v390, %v402
        %v425 = vadd.f32 %v391, %v402
        %v426 = vadd.f32 %v392, %v402
        %v427 = vadd.f32 %v393, %v402
        %v428 = vadd.f32 %v394, %v402
        %v429 = vadd.f32 %v395, %v402
        %v430 = vadd.f32 %v396, %v402
        %v431 = vadd.f32 %v397, %v402
        %v432 = vadd.f32 %v398, %v402
        %v433 = vadd.f32 %v399, %v402
        %v434 = vmax.f32 %v404, 0.0
        %v435 = vmax.f32 %v405, 0.0
        %v436 = vmax.f32 %v406, 0.0
        %v437 = vmax.f32 %v407, 0.0
        %v438 = vmax.f32 %v408, 0.0
        %v439 = vmax.f32 %v409, 0.0
        %v440 = vmax.f32 %v410, 0.0
        %v441 = vmax.f32 %v411, 0.0
        %v442 = vmax.f32 %v412, 0.0
        %v443 = vmax.f32 %v413, 0.0
        %v444 = vmax.f32 %v414, 0.0
        %v445 = vmax.f32 %v415, 0.0
        %v446 = vmax.f32 %v416, 0.0
        %v447 = vmax.f32 %v417, 0.0
        %v448 = vmax.f32 %v418, 0.0
        %v449 = vmax.f32 %v419, 0.0
        %v450 = vmax.f32 %v420, 0.0
        %v451 = vmax.f32 %v421, 0.0
        %v452 = vmax.f32 %v422, 0.0
        %v453 = vmax.f32 %v423, 0.0
        %v454 = vmax.f32 %v424, 0.0
        %v455 = vmax.f32 %v425, 0.0
        %v456 = vmax.f32 %v426, 0.0
        %v457 = vmax.f32 %v427, 0.0
        %v458 = vmax.f32 %v428, 0.0
        %v459 = vmax.f32 %v429, 0.0
        %v460 = vmax.f32 %v430, 0.0
        %v461 = vmax.f32 %v431, 0.0
        %v462 = vmax.f32 %v432, 0.0
        %v463 = vmax.f32 %v433, 0.0
        %s464 = smul.u32 %s25, 8
        %v465 = vstv %s464
        %v466 = vadd.s32 %v465, 1
        %v467 = vadd.s32 %v465, 2
        %v468 = vadd.s32 %v465, 3
        %v469 = vadd.s32 %v465, 4
        %v470 = vadd.s32 %v465, 5
        %v471 = vadd.s32 %v465, 6
        %v472 = vadd.s32 %v465, 7
        %v473 = vadd.s32 %v465, 8
        %v474 = vadd.s32 %v465, 9
        %v475 = vlaneseq
        %v476 = vshrl.u32 %v475, 7
        %v477 = vadd.s32 %v476, 8
        %v478 = vadd.s32 %v476, 16
        %vm479 = vcmp.ge.s32.totalorder %v465, 1
        %vm480 = vcmp.ge.s32.totalorder %v466, 1
        %vm481 = vcmp.ge.s32.totalorder %v467, 1
        %vm482 = vcmp.ge.s32.totalorder %v468, 1
        %vm483 = vcmp.ge.s32.totalorder %v469, 1
        %vm484 = vcmp.ge.s32.totalorder %v470, 1
        %vm485 = vcmp.ge.s32.totalorder %v471, 1
        %vm486 = vcmp.ge.s32.totalorder %v472, 1
        %vm487 = vcmp.ge.s32.totalorder %v473, 1
        %vm488 = vcmp.ge.s32.totalorder %v474, 1
        %vm489 = vcmp.le.s32.totalorder %v465, 16
        %vm490 = vcmp.le.s32.totalorder %v466, 16
        %vm491 = vcmp.le.s32.totalorder %v467, 16
        %vm492 = vcmp.le.s32.totalorder %v468, 16
        %vm493 = vcmp.le.s32.totalorder %v469, 16
        %vm494 = vcmp.le.s32.totalorder %v470, 16
        %vm495 = vcmp.le.s32.totalorder %v471, 16
        %vm496 = vcmp.le.s32.totalorder %v472, 16
        %vm497 = vcmp.le.s32.totalorder %v473, 16
        %vm498 = vcmp.le.s32.totalorder %v474, 16
        %vm499 = vmand %vm479, %vm489
        %vm500 = vmand %vm480, %vm490
        %vm501 = vmand %vm481, %vm491
        %vm502 = vmand %vm482, %vm492
        %vm503 = vmand %vm483, %vm493
        %vm504 = vmand %vm484, %vm494
        %vm505 = vmand %vm485, %vm495
        %vm506 = vmand %vm486, %vm496
        %vm507 = vmand %vm487, %vm497
        %vm508 = vmand %vm488, %vm498
        %vm509 = vcmp.ge.s32.totalorder %v476, 1
        %vm510 = vcmp.ge.s32.totalorder %v477, 1
        %vm511 = vcmp.ge.s32.totalorder %v478, 1
        %vm512 = vmand %vm499, %vm509
        %vm513 = vmand %vm499, %vm510
        %vm514 = vmand %vm499, %vm511
        %vm515 = vmand %vm500, %vm509
        %vm516 = vmand %vm500, %vm510
        %vm517 = vmand %vm500, %vm511
        %vm518 = vmand %vm501, %vm509
        %vm519 = vmand %vm501, %vm510
        %vm520 = vmand %vm501, %vm511
        %vm521 = vmand %vm502, %vm509
        %vm522 = vmand %vm502, %vm510
        %vm523 = vmand %vm502, %vm511
        %vm524 = vmand %vm503, %vm509
        %vm525 = vmand %vm503, %vm510
        %vm526 = vmand %vm503, %vm511
        %vm527 = vmand %vm504, %vm509
        %vm528 = vmand %vm504, %vm510
        %vm529 = vmand %vm504, %vm511
        %vm530 = vmand %vm505, %vm509
        %vm531 = vmand %vm505, %vm510
        %vm532 = vmand %vm505, %vm511
        %vm533 = vmand %vm506, %vm509
        %vm534 = vmand %vm506, %vm510
        %vm535 = vmand %vm506, %vm511
        %vm536 = vmand %vm507, %vm509
        %vm537 = vmand %vm507, %vm510
        %vm538 = vmand %vm507, %vm511
        %vm539 = vmand %vm508, %vm509
        %vm540 = vmand %vm508, %vm510
        %vm541 = vmand %vm508, %vm511
        %vm542 = vcmp.le.s32.totalorder %v476, 16
        %vm543 = vcmp.le.s32.totalorder %v477, 16
        %vm544 = vcmp.le.s32.totalorder %v478, 16
        %vm545 = vmand %vm512, %vm542
        %vm546 = vmand %vm513, %vm543
        %vm547 = vmand %vm514, %vm544
        %vm548 = vmand %vm515, %vm542
        %vm549 = vmand %vm516, %vm543
        %vm550 = vmand %vm517, %vm544
        %vm551 = vmand %vm518, %vm542
        %vm552 = vmand %vm519, %vm543
        %vm553 = vmand %vm520, %vm544
        %vm554 = vmand %vm521, %vm542
        %vm555 = vmand %vm522, %vm543
        %vm556 = vmand %vm523, %vm544
        %vm557 = vmand %vm524, %vm542
        %vm558 = vmand %vm525, %vm543
        %vm559 = vmand %vm526, %vm544
        %vm560 = vmand %vm527, %vm542
        %vm561 = vmand %vm528, %vm543
        %vm562 = vmand %vm529, %vm544
        %vm563 = vmand %vm530, %vm542
        %vm564 = vmand %vm531, %vm543
        %vm565 = vmand %vm532, %vm544
        %vm566 = vmand %vm533, %vm542
        %vm567 = vmand %vm534, %vm543
        %vm568 = vmand %vm535, %vm544
        %vm569 = vmand %vm536, %vm542
        %vm570 = vmand %vm537, %vm543
        %vm571 = vmand %vm538, %vm544
        %vm572 = vmand %vm539, %vm542
        %vm573 = vmand %vm540, %vm543
        %vm574 = vmand %vm541, %vm544
        %v575 = vsel %vm545, %v434, 0.0
        %v576 = vsel %vm546, %v435, 0.0
        %v577 = vsel %vm547, %v436, 0.0
        %v578 = vsel %vm548, %v437, 0.0
        %v579 = vsel %vm549, %v438, 0.0
        %v580 = vsel %vm550, %v439, 0.0
        %v581 = vsel %vm551, %v440, 0.0
        %v582 = vsel %vm552, %v441, 0.0
        %v583 = vsel %vm553, %v442, 0.0
        %v584 = vsel %vm554, %v443, 0.0
        %v585 = vsel %vm555, %v444, 0.0
        %v586 = vsel %vm556, %v445, 0.0
        %v587 = vsel %vm557, %v446, 0.0
        %v588 = vsel %vm558, %v447, 0.0
        %v589 = vsel %vm559, %v448, 0.0
        %v590 = vsel %vm560, %v449, 0.0
        %v591 = vsel %vm561, %v450, 0.0
        %v592 = vsel %vm562, %v451, 0.0
        %v593 = vsel %vm563, %v452, 0.0
        %v594 = vsel %vm564, %v453, 0.0
        %v595 = vsel %vm565, %v454, 0.0
        %v596 = vsel %vm566, %v455, 0.0
        %v597 = vsel %vm567, %v456, 0.0
        %v598 = vsel %vm568, %v457, 0.0
        %v599 = vsel %vm569, %v458, 0.0
        %v600 = vsel %vm570, %v459, 0.0
        %v601 = vsel %vm571, %v460, 0.0
        %v602 = vsel %vm572, %v461, 0.0
        %v603 = vsel %vm573, %v462, 0.0
        %v604 = vsel %vm574, %v463, 0.0
        %vm605 = vcmask 31744
        %606 = vst.msk [vmem:[#allocation2] sm:$0xff] %vm605, %v575
        %607 = vst.msk [vmem:[#allocation2 + $0x8] sm:$0xff] %vm605, %v576
        %608 = vst.msk [vmem:[#allocation2 + $0x10] sm:$0xff] %vm605, %v578
        %609 = vst.msk [vmem:[#allocation2 + $0x18] sm:$0xff] %vm605, %v579
        %610 = vst.msk [vmem:[#allocation2 + $0x20] sm:$0xff] %vm605, %v581
        %611 = vst.msk [vmem:[#allocation2 + $0x28] sm:$0xff] %vm605, %v582
        %612 = vst.msk [vmem:[#allocation2 + $0x30] sm:$0xff] %vm605, %v584
        %613 = vst.msk [vmem:[#allocation2 + $0x38] sm:$0xff] %vm605, %v585
        %614 = vst.msk [vmem:[#allocation2 + $0x40] sm:$0xff] %vm605, %v587
        %615 = vst.msk [vmem:[#allocation2 + $0x48] sm:$0xff] %vm605, %v588
        %616 = vst.msk [vmem:[#allocation2 + $0x50] sm:$0xff] %vm605, %v590
        %617 = vst.msk [vmem:[#allocation2 + $0x58] sm:$0xff] %vm605, %v591
        %618 = vst.msk [vmem:[#allocation2 + $0x60] sm:$0xff] %vm605, %v593
        %619 = vst.msk [vmem:[#allocation2 + $0x68] sm:$0xff] %vm605, %v594
        %620 = vst.msk [vmem:[#allocation2 + $0x70] sm:$0xff] %vm605, %v596
        %621 = vst.msk [vmem:[#allocation2 + $0x78] sm:$0xff] %vm605, %v597
        %vm646 = vcmask 1046528
        %v647 = vrot.slane %v575, 1
        %v648 = vrot.slane %v576, 1
        %v649 = vsel %vm646, %v647, %v648
        %v650 = vrot.slane %v577, 1
        %v651 = vsel %vm646, %v648, %v650
        %v652 = vrot.slane %v578, 1
        %v653 = vrot.slane %v579, 1
        %v654 = vsel %vm646, %v652, %v653
        %v655 = vrot.slane %v580, 1
        %v656 = vsel %vm646, %v653, %v655
        %v657 = vrot.slane %v581, 1
        %v658 = vrot.slane %v582, 1
        %v659 = vsel %vm646, %v657, %v658
        %v660 = vrot.slane %v583, 1
        %v661 = vsel %vm646, %v658, %v660
        %v662 = vrot.slane %v584, 1
        %v663 = vrot.slane %v585, 1
        %v664 = vsel %vm646, %v662, %v663
        %v665 = vrot.slane %v586, 1
        %v666 = vsel %vm646, %v663, %v665
        %v667 = vrot.slane %v587, 1
        %v668 = vrot.slane %v588, 1
        %v669 = vsel %vm646, %v667, %v668
        %v670 = vrot.slane %v589, 1
        %v671 = vsel %vm646, %v668, %v670
        %v672 = vrot.slane %v590, 1
        %v673 = vrot.slane %v591, 1
        %v674 = vsel %vm646, %v672, %v673
        %v675 = vrot.slane %v592, 1
        %v676 = vsel %vm646, %v673, %v675
        %v677 = vrot.slane %v593, 1
        %v678 = vrot.slane %v594, 1
        %v679 = vsel %vm646, %v677, %v678
        %v680 = vrot.slane %v595, 1
        %v681 = vsel %vm646, %v678, %v680
        %v682 = vrot.slane %v596, 1
        %v683 = vrot.slane %v597, 1
        %v684 = vsel %vm646, %v682, %v683
        %v685 = vrot.slane %v598, 1
        %v686 = vsel %vm646, %v683, %v685
        %687 = vrot.lane.b32.xlu0 %v649, 4
        %v688 = vpop.permute.xlu0 %687
        %689 = vrot.lane.b32.xlu0 %v651, 4
        %v690 = vpop.permute.xlu0 %689
        %691 = vrot.lane.b32.xlu0 %v654, 4
        %v692 = vpop.permute.xlu0 %691
        %693 = vrot.lane.b32.xlu0 %v656, 4
        %v694 = vpop.permute.xlu0 %693
        %695 = vrot.lane.b32.xlu0 %v659, 4
        %v696 = vpop.permute.xlu0 %695
        %697 = vrot.lane.b32.xlu0 %v661, 4
        %v698 = vpop.permute.xlu0 %697
        %699 = vrot.lane.b32.xlu0 %v664, 4
        %v700 = vpop.permute.xlu0 %699
        %701 = vrot.lane.b32.xlu0 %v666, 4
        %v702 = vpop.permute.xlu0 %701
        %703 = vrot.lane.b32.xlu0 %v669, 4
        %v704 = vpop.permute.xlu0 %703
        %705 = vrot.lane.b32.xlu0 %v671, 4
        %v706 = vpop.permute.xlu0 %705
        %707 = vrot.lane.b32.xlu0 %v674, 4
        %v708 = vpop.permute.xlu0 %707
        %709 = vrot.lane.b32.xlu0 %v676, 4
        %v710 = vpop.permute.xlu0 %709
        %711 = vrot.lane.b32.xlu0 %v679, 4
        %v712 = vpop.permute.xlu0 %711
        %713 = vrot.lane.b32.xlu0 %v681, 4
        %v714 = vpop.permute.xlu0 %713
        %715 = vrot.lane.b32.xlu0 %v684, 4
        %v716 = vpop.permute.xlu0 %715
        %717 = vrot.lane.b32.xlu0 %v686, 4
        %v718 = vpop.permute.xlu0 %717
        %vm735 = vcmask 64544
        %736 = vst.msk [vmem:[#allocation2] sm:$0xff] %vm735, %v688
        %737 = vst.msk [vmem:[#allocation2 + $0x8] sm:$0xff] %vm735, %v690
        %738 = vst.msk [vmem:[#allocation2 + $0x10] sm:$0xff] %vm735, %v692
        %739 = vst.msk [vmem:[#allocation2 + $0x18] sm:$0xff] %vm735, %v694
        %740 = vst.msk [vmem:[#allocation2 + $0x20] sm:$0xff] %vm735, %v696
        %741 = vst.msk [vmem:[#allocation2 + $0x28] sm:$0xff] %vm735, %v698
        %742 = vst.msk [vmem:[#allocation2 + $0x30] sm:$0xff] %vm735, %v700
        %743 = vst.msk [vmem:[#allocation2 + $0x38] sm:$0xff] %vm735, %v702
        %744 = vst.msk [vmem:[#allocation2 + $0x40] sm:$0xff] %vm735, %v704
        %745 = vst.msk [vmem:[#allocation2 + $0x48] sm:$0xff] %vm735, %v706
        %746 = vst.msk [vmem:[#allocation2 + $0x50] sm:$0xff] %vm735, %v708
        %747 = vst.msk [vmem:[#allocation2 + $0x58] sm:$0xff] %vm735, %v710
        %748 = vst.msk [vmem:[#allocation2 + $0x60] sm:$0xff] %vm735, %v712
        %749 = vst.msk [vmem:[#allocation2 + $0x68] sm:$0xff] %vm735, %v714
        %750 = vst.msk [vmem:[#allocation2 + $0x70] sm:$0xff] %vm735, %v716
        %751 = vst.msk [vmem:[#allocation2 + $0x78] sm:$0xff] %vm735, %v718
        %vm752 = vcmask 1045504
        %v753 = vrot.slane %v575, 2
        %v754 = vrot.slane %v576, 2
        %v755 = vsel %vm752, %v753, %v754
        %v756 = vrot.slane %v577, 2
        %v757 = vsel %vm752, %v754, %v756
        %v758 = vrot.slane %v578, 2
        %v759 = vrot.slane %v579, 2
        %v760 = vsel %vm752, %v758, %v759
        %v761 = vrot.slane %v580, 2
        %v762 = vsel %vm752, %v759, %v761
        %v763 = vrot.slane %v581, 2
        %v764 = vrot.slane %v582, 2
        %v765 = vsel %vm752, %v763, %v764
        %v766 = vrot.slane %v583, 2
        %v767 = vsel %vm752, %v764, %v766
        %v768 = vrot.slane %v584, 2
        %v769 = vrot.slane %v585, 2
        %v770 = vsel %vm752, %v768, %v769
        %v771 = vrot.slane %v586, 2
        %v772 = vsel %vm752, %v769, %v771
        %v773 = vrot.slane %v587, 2
        %v774 = vrot.slane %v588, 2
        %v775 = vsel %vm752, %v773, %v774
        %v776 = vrot.slane %v589, 2
        %v777 = vsel %vm752, %v774, %v776
        %v778 = vrot.slane %v590, 2
        %v779 = vrot.slane %v591, 2
        %v780 = vsel %vm752, %v778, %v779
        %v781 = vrot.slane %v592, 2
        %v782 = vsel %vm752, %v779, %v781
        %v783 = vrot.slane %v593, 2
        %v784 = vrot.slane %v594, 2
        %v785 = vsel %vm752, %v783, %v784
        %v786 = vrot.slane %v595, 2
        %v787 = vsel %vm752, %v784, %v786
        %v788 = vrot.slane %v596, 2
        %v789 = vrot.slane %v597, 2
        %v790 = vsel %vm752, %v788, %v789
        %v791 = vrot.slane %v598, 2
        %v792 = vsel %vm752, %v789, %v791
        %793 = vrot.lane.b32.xlu0 %v755, 8
        %v794 = vpop.permute.xlu0 %793
        %795 = vrot.lane.b32.xlu0 %v757, 8
        %v796 = vpop.permute.xlu0 %795
        %797 = vrot.lane.b32.xlu0 %v760, 8
        %v798 = vpop.permute.xlu0 %797
        %799 = vrot.lane.b32.xlu0 %v762, 8
        %v800 = vpop.permute.xlu0 %799
        %801 = vrot.lane.b32.xlu0 %v765, 8
        %v802 = vpop.permute.xlu0 %801
        %803 = vrot.lane.b32.xlu0 %v767, 8
        %v804 = vpop.permute.xlu0 %803
        %805 = vrot.lane.b32.xlu0 %v770, 8
        %v806 = vpop.permute.xlu0 %805
        %807 = vrot.lane.b32.xlu0 %v772, 8
        %v808 = vpop.permute.xlu0 %807
        %809 = vrot.lane.b32.xlu0 %v775, 8
        %v810 = vpop.permute.xlu0 %809
        %811 = vrot.lane.b32.xlu0 %v777, 8
        %v812 = vpop.permute.xlu0 %811
        %813 = vrot.lane.b32.xlu0 %v780, 8
        %v814 = vpop.permute.xlu0 %813
        %815 = vrot.lane.b32.xlu0 %v782, 8
        %v816 = vpop.permute.xlu0 %815
        %817 = vrot.lane.b32.xlu0 %v785, 8
        %v818 = vpop.permute.xlu0 %817
        %819 = vrot.lane.b32.xlu0 %v787, 8
        %v820 = vpop.permute.xlu0 %819
        %821 = vrot.lane.b32.xlu0 %v790, 8
        %v822 = vpop.permute.xlu0 %821
        %823 = vrot.lane.b32.xlu0 %v792, 8
        %v824 = vpop.permute.xlu0 %823
        %vm841 = vcmask 97344
        %842 = vst.msk [vmem:[#allocation2] sm:$0xff] %vm841, %v794
        %843 = vst.msk [vmem:[#allocation2 + $0x8] sm:$0xff] %vm841, %v796
        %844 = vst.msk [vmem:[#allocation2 + $0x10] sm:$0xff] %vm841, %v798
        %845 = vst.msk [vmem:[#allocation2 + $0x18] sm:$0xff] %vm841, %v800
        %846 = vst.msk [vmem:[#allocation2 + $0x20] sm:$0xff] %vm841, %v802
        %847 = vst.msk [vmem:[#allocation2 + $0x28] sm:$0xff] %vm841, %v804
        %848 = vst.msk [vmem:[#allocation2 + $0x30] sm:$0xff] %vm841, %v806
        %849 = vst.msk [vmem:[#allocation2 + $0x38] sm:$0xff] %vm841, %v808
        %850 = vst.msk [vmem:[#allocation2 + $0x40] sm:$0xff] %vm841, %v810
        %851 = vst.msk [vmem:[#allocation2 + $0x48] sm:$0xff] %vm841, %v812
        %852 = vst.msk [vmem:[#allocation2 + $0x50] sm:$0xff] %vm841, %v814
        %853 = vst.msk [vmem:[#allocation2 + $0x58] sm:$0xff] %vm841, %v816
        %854 = vst.msk [vmem:[#allocation2 + $0x60] sm:$0xff] %vm841, %v818
        %855 = vst.msk [vmem:[#allocation2 + $0x68] sm:$0xff] %vm841, %v820
        %856 = vst.msk [vmem:[#allocation2 + $0x70] sm:$0xff] %vm841, %v822
        %857 = vst.msk [vmem:[#allocation2 + $0x78] sm:$0xff] %vm841, %v824
        %860 = vrot.lane.b32.xlu0 %v578, 12
        %v861 = vpop.permute.xlu0 %860
        %862 = vrot.lane.b32.xlu0 %v579, 12
        %v863 = vpop.permute.xlu0 %862
        %864 = vrot.lane.b32.xlu0 %v581, 12
        %v865 = vpop.permute.xlu0 %864
        %866 = vrot.lane.b32.xlu0 %v582, 12
        %v867 = vpop.permute.xlu0 %866
        %868 = vrot.lane.b32.xlu0 %v584, 12
        %v869 = vpop.permute.xlu0 %868
        %870 = vrot.lane.b32.xlu0 %v585, 12
        %v871 = vpop.permute.xlu0 %870
        %872 = vrot.lane.b32.xlu0 %v587, 12
        %v873 = vpop.permute.xlu0 %872
        %874 = vrot.lane.b32.xlu0 %v588, 12
        %v875 = vpop.permute.xlu0 %874
        %876 = vrot.lane.b32.xlu0 %v590, 12
        %v877 = vpop.permute.xlu0 %876
        %878 = vrot.lane.b32.xlu0 %v591, 12
        %v879 = vpop.permute.xlu0 %878
        %880 = vrot.lane.b32.xlu0 %v593, 12
        %v881 = vpop.permute.xlu0 %880
        %882 = vrot.lane.b32.xlu0 %v594, 12
        %v883 = vpop.permute.xlu0 %882
        %884 = vrot.lane.b32.xlu0 %v596, 12
        %v885 = vpop.permute.xlu0 %884
        %886 = vrot.lane.b32.xlu0 %v597, 12
        %v887 = vpop.permute.xlu0 %886
        %888 = vrot.lane.b32.xlu0 %v599, 12
        %v889 = vpop.permute.xlu0 %888
        %890 = vrot.lane.b32.xlu0 %v600, 12
        %v891 = vpop.permute.xlu0 %890
        %vm908 = vcmask 130144
        %909 = vst.msk [vmem:[#allocation2] sm:$0xff] %vm908, %v861
        %910 = vst.msk [vmem:[#allocation2 + $0x8] sm:$0xff] %vm908, %v863
        %911 = vst.msk [vmem:[#allocation2 + $0x10] sm:$0xff] %vm908, %v865
        %912 = vst.msk [vmem:[#allocation2 + $0x18] sm:$0xff] %vm908, %v867
        %913 = vst.msk [vmem:[#allocation2 + $0x20] sm:$0xff] %vm908, %v869
        %914 = vst.msk [vmem:[#allocation2 + $0x28] sm:$0xff] %vm908, %v871
        %915 = vst.msk [vmem:[#allocation2 + $0x30] sm:$0xff] %vm908, %v873
        %916 = vst.msk [vmem:[#allocation2 + $0x38] sm:$0xff] %vm908, %v875
        %917 = vst.msk [vmem:[#allocation2 + $0x40] sm:$0xff] %vm908, %v877
        %918 = vst.msk [vmem:[#allocation2 + $0x48] sm:$0xff] %vm908, %v879
        %919 = vst.msk [vmem:[#allocation2 + $0x50] sm:$0xff] %vm908, %v881
        %920 = vst.msk [vmem:[#allocation2 + $0x58] sm:$0xff] %vm908, %v883
        %921 = vst.msk [vmem:[#allocation2 + $0x60] sm:$0xff] %vm908, %v885
        %922 = vst.msk [vmem:[#allocation2 + $0x68] sm:$0xff] %vm908, %v887
        %923 = vst.msk [vmem:[#allocation2 + $0x70] sm:$0xff] %vm908, %v889
        %924 = vst.msk [vmem:[#allocation2 + $0x78] sm:$0xff] %vm908, %v891
        %v926 = vrot.slane %v599, 1
        %v927 = vrot.slane %v600, 1
        %v928 = vsel %vm646, %v926, %v927
        %v929 = vrot.slane %v601, 1
        %v930 = vsel %vm646, %v927, %v929
        %931 = vrot.lane.b32.xlu0 %v654, 16
        %v932 = vpop.permute.xlu0 %931
        %933 = vrot.lane.b32.xlu0 %v656, 16
        %v934 = vpop.permute.xlu0 %933
        %935 = vrot.lane.b32.xlu0 %v659, 16
        %v936 = vpop.permute.xlu0 %935
        %937 = vrot.lane.b32.xlu0 %v661, 16
        %v938 = vpop.permute.xlu0 %937
        %939 = vrot.lane.b32.xlu0 %v664, 16
        %v940 = vpop.permute.xlu0 %939
        %941 = vrot.lane.b32.xlu0 %v666, 16
        %v942 = vpop.permute.xlu0 %941
        %943 = vrot.lane.b32.xlu0 %v669, 16
        %v944 = vpop.permute.xlu0 %943
        %945 = vrot.lane.b32.xlu0 %v671, 16
        %v946 = vpop.permute.xlu0 %945
        %947 = vrot.lane.b32.xlu0 %v674, 16
        %v948 = vpop.permute.xlu0 %947
        %949 = vrot.lane.b32.xlu0 %v676, 16
        %v950 = vpop.permute.xlu0 %949
        %951 = vrot.lane.b32.xlu0 %v679, 16
        %v952 = vpop.permute.xlu0 %951
        %953 = vrot.lane.b32.xlu0 %v681, 16
        %v954 = vpop.permute.xlu0 %953
        %955 = vrot.lane.b32.xlu0 %v684, 16
        %v956 = vpop.permute.xlu0 %955
        %957 = vrot.lane.b32.xlu0 %v686, 16
        %v958 = vpop.permute.xlu0 %957
        %959 = vrot.lane.b32.xlu0 %v928, 16
        %v960 = vpop.permute.xlu0 %959
        %961 = vrot.lane.b32.xlu0 %v930, 16
        %v962 = vpop.permute.xlu0 %961
        %vm979 = vcmask 162944
        %980 = vst.msk [vmem:[#allocation2] sm:$0xff] %vm979, %v932
        %981 = vst.msk [vmem:[#allocation2 + $0x8] sm:$0xff] %vm979, %v934
        %982 = vst.msk [vmem:[#allocation2 + $0x10] sm:$0xff] %vm979, %v936
        %983 = vst.msk [vmem:[#allocation2 + $0x18] sm:$0xff] %vm979, %v938
        %984 = vst.msk [vmem:[#allocation2 + $0x20] sm:$0xff] %vm979, %v940
        %985 = vst.msk [vmem:[#allocation2 + $0x28] sm:$0xff] %vm979, %v942
        %986 = vst.msk [vmem:[#allocation2 + $0x30] sm:$0xff] %vm979, %v944
        %987 = vst.msk [vmem:[#allocation2 + $0x38] sm:$0xff] %vm979, %v946
        %988 = vst.msk [vmem:[#allocation2 + $0x40] sm:$0xff] %vm979, %v948
        %989 = vst.msk [vmem:[#allocation2 + $0x48] sm:$0xff] %vm979, %v950
        %990 = vst.msk [vmem:[#allocation2 + $0x50] sm:$0xff] %vm979, %v952
        %991 = vst.msk [vmem:[#allocation2 + $0x58] sm:$0xff] %vm979, %v954
        %992 = vst.msk [vmem:[#allocation2 + $0x60] sm:$0xff] %vm979, %v956
        %993 = vst.msk [vmem:[#allocation2 + $0x68] sm:$0xff] %vm979, %v958
        %994 = vst.msk [vmem:[#allocation2 + $0x70] sm:$0xff] %vm979, %v960
        %995 = vst.msk [vmem:[#allocation2 + $0x78] sm:$0xff] %vm979, %v962
        %v996 = vrot.slane %v599, 2
        %v997 = vrot.slane %v600, 2
        %v998 = vsel %vm752, %v996, %v997
        %v999 = vrot.slane %v601, 2
        %v1000 = vsel %vm752, %v997, %v999
        %1001 = vrot.lane.b32.xlu0 %v760, 20
        %v1002 = vpop.permute.xlu0 %1001
        %1003 = vrot.lane.b32.xlu0 %v762, 20
        %v1004 = vpop.permute.xlu0 %1003
        %1005 = vrot.lane.b32.xlu0 %v765, 20
        %v1006 = vpop.permute.xlu0 %1005
        %1007 = vrot.lane.b32.xlu0 %v767, 20
        %v1008 = vpop.permute.xlu0 %1007
        %1009 = vrot.lane.b32.xlu0 %v770, 20
        %v1010 = vpop.permute.xlu0 %1009
        %1011 = vrot.lane.b32.xlu0 %v772, 20
        %v1012 = vpop.permute.xlu0 %1011
        %1013 = vrot.lane.b32.xlu0 %v775, 20
        %v1014 = vpop.permute.xlu0 %1013
        %1015 = vrot.lane.b32.xlu0 %v777, 20
        %v1016 = vpop.permute.xlu0 %1015
        %1017 = vrot.lane.b32.xlu0 %v780, 20
        %v1018 = vpop.permute.xlu0 %1017
        %1019 = vrot.lane.b32.xlu0 %v782, 20
        %v1020 = vpop.permute.xlu0 %1019
        %1021 = vrot.lane.b32.xlu0 %v785, 20
        %v1022 = vpop.permute.xlu0 %1021
        %1023 = vrot.lane.b32.xlu0 %v787, 20
        %v1024 = vpop.permute.xlu0 %1023
        %1025 = vrot.lane.b32.xlu0 %v790, 20
        %v1026 = vpop.permute.xlu0 %1025
        %1027 = vrot.lane.b32.xlu0 %v792, 20
        %v1028 = vpop.permute.xlu0 %1027
        %1029 = vrot.lane.b32.xlu0 %v998, 20
        %v1030 = vpop.permute.xlu0 %1029
        %1031 = vrot.lane.b32.xlu0 %v1000, 20
        %v1032 = vpop.permute.xlu0 %1031
        %vm1049 = vcmask 195744
        %1050 = vst.msk [vmem:[#allocation2] sm:$0xff] %vm1049, %v1002
        %1051 = vst.msk [vmem:[#allocation2 + $0x8] sm:$0xff] %vm1049, %v1004
        %1052 = vst.msk [vmem:[#allocation2 + $0x10] sm:$0xff] %vm1049, %v1006
        %1053 = vst.msk [vmem:[#allocation2 + $0x18] sm:$0xff] %vm1049, %v1008
        %1054 = vst.msk [vmem:[#allocation2 + $0x20] sm:$0xff] %vm1049, %v1010
        %1055 = vst.msk [vmem:[#allocation2 + $0x28] sm:$0xff] %vm1049, %v1012
        %1056 = vst.msk [vmem:[#allocation2 + $0x30] sm:$0xff] %vm1049, %v1014
        %1057 = vst.msk [vmem:[#allocation2 + $0x38] sm:$0xff] %vm1049, %v1016
        %1058 = vst.msk [vmem:[#allocation2 + $0x40] sm:$0xff] %vm1049, %v1018
        %1059 = vst.msk [vmem:[#allocation2 + $0x48] sm:$0xff] %vm1049, %v1020
        %1060 = vst.msk [vmem:[#allocation2 + $0x50] sm:$0xff] %vm1049, %v1022
        %1061 = vst.msk [vmem:[#allocation2 + $0x58] sm:$0xff] %vm1049, %v1024
        %1062 = vst.msk [vmem:[#allocation2 + $0x60] sm:$0xff] %vm1049, %v1026
        %1063 = vst.msk [vmem:[#allocation2 + $0x68] sm:$0xff] %vm1049, %v1028
        %1064 = vst.msk [vmem:[#allocation2 + $0x70] sm:$0xff] %vm1049, %v1030
        %1065 = vst.msk [vmem:[#allocation2 + $0x78] sm:$0xff] %vm1049, %v1032
        %1068 = vrot.lane.b32.xlu0 %v581, 24
        %v1069 = vpop.permute.xlu0 %1068
        %1070 = vrot.lane.b32.xlu0 %v582, 24
        %v1071 = vpop.permute.xlu0 %1070
        %1072 = vrot.lane.b32.xlu0 %v584, 24
        %v1073 = vpop.permute.xlu0 %1072
        %1074 = vrot.lane.b32.xlu0 %v585, 24
        %v1075 = vpop.permute.xlu0 %1074
        %1076 = vrot.lane.b32.xlu0 %v587, 24
        %v1077 = vpop.permute.xlu0 %1076
        %1078 = vrot.lane.b32.xlu0 %v588, 24
        %v1079 = vpop.permute.xlu0 %1078
        %1080 = vrot.lane.b32.xlu0 %v590, 24
        %v1081 = vpop.permute.xlu0 %1080
        %1082 = vrot.lane.b32.xlu0 %v591, 24
        %v1083 = vpop.permute.xlu0 %1082
        %1084 = vrot.lane.b32.xlu0 %v593, 24
        %v1085 = vpop.permute.xlu0 %1084
        %1086 = vrot.lane.b32.xlu0 %v594, 24
        %v1087 = vpop.permute.xlu0 %1086
        %1088 = vrot.lane.b32.xlu0 %v596, 24
        %v1089 = vpop.permute.xlu0 %1088
        %1090 = vrot.lane.b32.xlu0 %v597, 24
        %v1091 = vpop.permute.xlu0 %1090
        %1092 = vrot.lane.b32.xlu0 %v599, 24
        %v1093 = vpop.permute.xlu0 %1092
        %1094 = vrot.lane.b32.xlu0 %v600, 24
        %v1095 = vpop.permute.xlu0 %1094
        %1096 = vrot.lane.b32.xlu0 %v602, 24
        %v1097 = vpop.permute.xlu0 %1096
        %1098 = vrot.lane.b32.xlu0 %v603, 24
        %v1099 = vpop.permute.xlu0 %1098
        %vm1116 = vcmask 228544
        %1117 = vst.msk [vmem:[#allocation2] sm:$0xff] %vm1116, %v1069
        %1118 = vst.msk [vmem:[#allocation2 + $0x8] sm:$0xff] %vm1116, %v1071
        %1119 = vst.msk [vmem:[#allocation2 + $0x10] sm:$0xff] %vm1116, %v1073
        %1120 = vst.msk [vmem:[#allocation2 + $0x18] sm:$0xff] %vm1116, %v1075
        %1121 = vst.msk [vmem:[#allocation2 + $0x20] sm:$0xff] %vm1116, %v1077
        %1122 = vst.msk [vmem:[#allocation2 + $0x28] sm:$0xff] %vm1116, %v1079
        %1123 = vst.msk [vmem:[#allocation2 + $0x30] sm:$0xff] %vm1116, %v1081
        %1124 = vst.msk [vmem:[#allocation2 + $0x38] sm:$0xff] %vm1116, %v1083
        %1125 = vst.msk [vmem:[#allocation2 + $0x40] sm:$0xff] %vm1116, %v1085
        %1126 = vst.msk [vmem:[#allocation2 + $0x48] sm:$0xff] %vm1116, %v1087
        %1127 = vst.msk [vmem:[#allocation2 + $0x50] sm:$0xff] %vm1116, %v1089
        %1128 = vst.msk [vmem:[#allocation2 + $0x58] sm:$0xff] %vm1116, %v1091
        %1129 = vst.msk [vmem:[#allocation2 + $0x60] sm:$0xff] %vm1116, %v1093
        %1130 = vst.msk [vmem:[#allocation2 + $0x68] sm:$0xff] %vm1116, %v1095
        %1131 = vst.msk [vmem:[#allocation2 + $0x70] sm:$0xff] %vm1116, %v1097
        %1132 = vst.msk [vmem:[#allocation2 + $0x78] sm:$0xff] %vm1116, %v1099
        %v1134 = vrot.slane %v602, 1
        %v1135 = vrot.slane %v603, 1
        %v1136 = vsel %vm646, %v1134, %v1135
        %v1137 = vrot.slane %v604, 1
        %v1138 = vsel %vm646, %v1135, %v1137
        %1139 = vrot.lane.b32.xlu0 %v659, 28
        %v1140 = vpop.permute.xlu0 %1139
        %1141 = vrot.lane.b32.xlu0 %v661, 28
        %v1142 = vpop.permute.xlu0 %1141
        %1143 = vrot.lane.b32.xlu0 %v664, 28
        %v1144 = vpop.permute.xlu0 %1143
        %1145 = vrot.lane.b32.xlu0 %v666, 28
        %v1146 = vpop.permute.xlu0 %1145
        %1147 = vrot.lane.b32.xlu0 %v669, 28
        %v1148 = vpop.permute.xlu0 %1147
        %1149 = vrot.lane.b32.xlu0 %v671, 28
        %v1150 = vpop.permute.xlu0 %1149
        %1151 = vrot.lane.b32.xlu0 %v674, 28
        %v1152 = vpop.permute.xlu0 %1151
        %1153 = vrot.lane.b32.xlu0 %v676, 28
        %v1154 = vpop.permute.xlu0 %1153
        %1155 = vrot.lane.b32.xlu0 %v679, 28
        %v1156 = vpop.permute.xlu0 %1155
        %1157 = vrot.lane.b32.xlu0 %v681, 28
        %v1158 = vpop.permute.xlu0 %1157
        %1159 = vrot.lane.b32.xlu0 %v684, 28
        %v1160 = vpop.permute.xlu0 %1159
        %1161 = vrot.lane.b32.xlu0 %v686, 28
        %v1162 = vpop.permute.xlu0 %1161
        %1163 = vrot.lane.b32.xlu0 %v928, 28
        %v1164 = vpop.permute.xlu0 %1163
        %1165 = vrot.lane.b32.xlu0 %v930, 28
        %v1166 = vpop.permute.xlu0 %1165
        %1167 = vrot.lane.b32.xlu0 %v1136, 28
        %v1168 = vpop.permute.xlu0 %1167
        %1169 = vrot.lane.b32.xlu0 %v1138, 28
        %v1170 = vpop.permute.xlu0 %1169
        %vm1187 = vcmask 261344
        %1188 = vst.msk [vmem:[#allocation2] sm:$0xff] %vm1187, %v1140
        %1189 = vst.msk [vmem:[#allocation2 + $0x8] sm:$0xff] %vm1187, %v1142
        %1190 = vst.msk [vmem:[#allocation2 + $0x10] sm:$0xff] %vm1187, %v1144
        %1191 = vst.msk [vmem:[#allocation2 + $0x18] sm:$0xff] %vm1187, %v1146
        %1192 = vst.msk [vmem:[#allocation2 + $0x20] sm:$0xff] %vm1187, %v1148
        %1193 = vst.msk [vmem:[#allocation2 + $0x28] sm:$0xff] %vm1187, %v1150
        %1194 = vst.msk [vmem:[#allocation2 + $0x30] sm:$0xff] %vm1187, %v1152
        %1195 = vst.msk [vmem:[#allocation2 + $0x38] sm:$0xff] %vm1187, %v1154
        %1196 = vst.msk [vmem:[#allocation2 + $0x40] sm:$0xff] %vm1187, %v1156
        %1197 = vst.msk [vmem:[#allocation2 + $0x48] sm:$0xff] %vm1187, %v1158
        %1198 = vst.msk [vmem:[#allocation2 + $0x50] sm:$0xff] %vm1187, %v1160
        %1199 = vst.msk [vmem:[#allocation2 + $0x58] sm:$0xff] %vm1187, %v1162
        %1200 = vst.msk [vmem:[#allocation2 + $0x60] sm:$0xff] %vm1187, %v1164
        %1201 = vst.msk [vmem:[#allocation2 + $0x68] sm:$0xff] %vm1187, %v1166
        %1202 = vst.msk [vmem:[#allocation2 + $0x70] sm:$0xff] %vm1187, %v1168
        %1203 = vst.msk [vmem:[#allocation2 + $0x78] sm:$0xff] %vm1187, %v1170
        %v1204 = vrot.slane %v602, 2
        %v1205 = vrot.slane %v603, 2
        %v1206 = vsel %vm752, %v1204, %v1205
        %v1207 = vrot.slane %v604, 2
        %v1208 = vsel %vm752, %v1205, %v1207
        %1209 = vrot.lane.b32.xlu0 %v765, 32
        %v1210 = vpop.permute.xlu0 %1209
        %1211 = vrot.lane.b32.xlu0 %v767, 32
        %v1212 = vpop.permute.xlu0 %1211
        %1213 = vrot.lane.b32.xlu0 %v770, 32
        %v1214 = vpop.permute.xlu0 %1213
        %1215 = vrot.lane.b32.xlu0 %v772, 32
        %v1216 = vpop.permute.xlu0 %1215
        %1217 = vrot.lane.b32.xlu0 %v775, 32
        %v1218 = vpop.permute.xlu0 %1217
        %1219 = vrot.lane.b32.xlu0 %v777, 32
        %v1220 = vpop.permute.xlu0 %1219
        %1221 = vrot.lane.b32.xlu0 %v780, 32
        %v1222 = vpop.permute.xlu0 %1221
        %1223 = vrot.lane.b32.xlu0 %v782, 32
        %v1224 = vpop.permute.xlu0 %1223
        %1225 = vrot.lane.b32.xlu0 %v785, 32
        %v1226 = vpop.permute.xlu0 %1225
        %1227 = vrot.lane.b32.xlu0 %v787, 32
        %v1228 = vpop.permute.xlu0 %1227
        %1229 = vrot.lane.b32.xlu0 %v790, 32
        %v1230 = vpop.permute.xlu0 %1229
        %1231 = vrot.lane.b32.xlu0 %v792, 32
        %v1232 = vpop.permute.xlu0 %1231
        %1233 = vrot.lane.b32.xlu0 %v998, 32
        %v1234 = vpop.permute.xlu0 %1233
        %1235 = vrot.lane.b32.xlu0 %v1000, 32
        %v1236 = vpop.permute.xlu0 %1235
        %1237 = vrot.lane.b32.xlu0 %v1206, 32
        %v1238 = vpop.permute.xlu0 %1237
        %1239 = vrot.lane.b32.xlu0 %v1208, 32
        %v1240 = vpop.permute.xlu0 %1239
        %vm1257 = vcmask 294144
        %1258 = vst.msk [vmem:[#allocation2] sm:$0xff] %vm1257, %v1210
        %1259 = vst.msk [vmem:[#allocation2 + $0x8] sm:$0xff] %vm1257, %v1212
        %1260 = vst.msk [vmem:[#allocation2 + $0x10] sm:$0xff] %vm1257, %v1214
        %1261 = vst.msk [vmem:[#allocation2 + $0x18] sm:$0xff] %vm1257, %v1216
        %1262 = vst.msk [vmem:[#allocation2 + $0x20] sm:$0xff] %vm1257, %v1218
        %1263 = vst.msk [vmem:[#allocation2 + $0x28] sm:$0xff] %vm1257, %v1220
        %1264 = vst.msk [vmem:[#allocation2 + $0x30] sm:$0xff] %vm1257, %v1222
        %1265 = vst.msk [vmem:[#allocation2 + $0x38] sm:$0xff] %vm1257, %v1224
        %1266 = vst.msk [vmem:[#allocation2 + $0x40] sm:$0xff] %vm1257, %v1226
        %1267 = vst.msk [vmem:[#allocation2 + $0x48] sm:$0xff] %vm1257, %v1228
        %1268 = vst.msk [vmem:[#allocation2 + $0x50] sm:$0xff] %vm1257, %v1230
        %1269 = vst.msk [vmem:[#allocation2 + $0x58] sm:$0xff] %vm1257, %v1232
        %1270 = vst.msk [vmem:[#allocation2 + $0x60] sm:$0xff] %vm1257, %v1234
        %1271 = vst.msk [vmem:[#allocation2 + $0x68] sm:$0xff] %vm1257, %v1236
        %1272 = vst.msk [vmem:[#allocation2 + $0x70] sm:$0xff] %vm1257, %v1238
        %1273 = vst.msk [vmem:[#allocation2 + $0x78] sm:$0xff] %vm1257, %v1240
        %v1274 = vld [vmem:[#allocation2] sm:$0xff]
        %v1275 = vld [vmem:[#allocation2 + $0x8] sm:$0xff]
        %v1276 = vld [vmem:[#allocation2 + $0x10] sm:$0xff]
        %v1277 = vld [vmem:[#allocation2 + $0x18] sm:$0xff]
        %v1278 = vld [vmem:[#allocation2 + $0x20] sm:$0xff]
        %v1279 = vld [vmem:[#allocation2 + $0x28] sm:$0xff]
        %v1280 = vld [vmem:[#allocation2 + $0x30] sm:$0xff]
        %v1281 = vld [vmem:[#allocation2 + $0x38] sm:$0xff]
        %v1282 = vld [vmem:[#allocation2 + $0x40] sm:$0xff]
        %v1283 = vld [vmem:[#allocation2 + $0x48] sm:$0xff]
        %v1284 = vld [vmem:[#allocation2 + $0x50] sm:$0xff]
        %v1285 = vld [vmem:[#allocation2 + $0x58] sm:$0xff]
        %v1286 = vld [vmem:[#allocation2 + $0x60] sm:$0xff]
        %v1287 = vld [vmem:[#allocation2 + $0x68] sm:$0xff]
        %v1288 = vld [vmem:[#allocation2 + $0x70] sm:$0xff]
        %v1289 = vld [vmem:[#allocation2 + $0x78] sm:$0xff]
        %v1290 = vld [vmem:[%s4] sm:$0xff]
        %v1291 = vld [vmem:[%s4 + $0x8] sm:$0xff]
        %v1292 = vld [vmem:[%s4 + $0x10] sm:$0xff]
        %v1293 = vld [vmem:[%s4 + $0x18] sm:$0xff]
        %v1294 = vld [vmem:[%s4 + $0x20] sm:$0xf]
        %vm1295 = vcmask 293888
        %v1297 = vsel %vm1295, %v1274, 0
        %v1300 = vsel %vm1295, %v1275, 0
        %v1303 = vsel %vm1295, %v1276, 0
        %v1306 = vsel %vm1295, %v1277, 0
        %v1309 = vsel %vm1295, %v1278, 0
        %v1312 = vsel %vm1295, %v1279, 0
        %v1315 = vsel %vm1295, %v1280, 0
        %v1318 = vsel %vm1295, %v1281, 0
        %v1321 = vsel %vm1295, %v1282, 0
        %v1324 = vsel %vm1295, %v1283, 0
        %v1327 = vsel %vm1295, %v1284, 0
        %v1330 = vsel %vm1295, %v1285, 0
        %v1333 = vsel %vm1295, %v1286, 0
        %v1336 = vsel %vm1295, %v1287, 0
        %v1339 = vsel %vm1295, %v1288, 0
        %v1342 = vsel %vm1295, %v1289, 0
        %vm1344 = vcmask 1043456
        %v1346 = vsel %vm1344, %v1294, 0
        %1348 = vmatpush.msra.mxu0 0.0
        %1349 = vmatpush.msra.mxu0 0.0
        %1350 = vmatpush.msra.mxu0 0.0
        %1351 = vmatpush.msra.mxu0 0.0
        %1352 = vmatpush.msra.mxu0 0.0
        %1353 = vmatpush.msra.mxu0 0.0
        %1354 = vmatpush.msra.mxu0 0.0
        %1355 = vmatpush.msra.mxu0 0.0
        %1356 = vmatpush.msra.mxu0 0.0
        %1357 = vmatpush.msra.mxu0 0.0
        %1358 = vmatpush.msra.mxu0 0.0
        %1359 = vmatpush.msra.mxu0 %v1346
        %1360 = vmatpush.msra.mxu0 %v1293
        %1361 = vmatpush.msra.mxu0 %v1292
        %1362 = vmatpush.msra.mxu0 %v1291
        %1363 = vmatpush.msra.mxu0 %v1290
        %1364 = vmatmul.f32.gmra.mxu0 %v1297
        %v1365 = vpop.f32.mrf.mxu0
        %v1366 = vadd.f32 0.0, %v1365
        %1367 = vmatmul.f32.gmra.mxu0 %v1300
        %v1368 = vpop.f32.mrf.mxu0
        %v1369 = vadd.f32 0.0, %v1368
        %1370 = vmatmul.f32.gmra.mxu0 %v1303
        %v1371 = vpop.f32.mrf.mxu0
        %v1372 = vadd.f32 0.0, %v1371
        %1373 = vmatmul.f32.gmra.mxu0 %v1306
        %v1374 = vpop.f32.mrf.mxu0
        %v1375 = vadd.f32 0.0, %v1374
        %1376 = vmatmul.f32.gmra.mxu0 %v1309
        %v1377 = vpop.f32.mrf.mxu0
        %v1378 = vadd.f32 0.0, %v1377
        %1379 = vmatmul.f32.gmra.mxu0 %v1312
        %v1380 = vpop.f32.mrf.mxu0
        %v1381 = vadd.f32 0.0, %v1380
        %1382 = vmatmul.f32.gmra.mxu0 %v1315
        %v1383 = vpop.f32.mrf.mxu0
        %v1384 = vadd.f32 0.0, %v1383
        %1385 = vmatmul.f32.gmra.mxu0 %v1318
        %v1386 = vpop.f32.mrf.mxu0
        %v1387 = vadd.f32 0.0, %v1386
        %1388 = vmatmul.f32.gmra.mxu0 %v1321
        %v1389 = vpop.f32.mrf.mxu0
        %v1390 = vadd.f32 0.0, %v1389
        %1391 = vmatmul.f32.gmra.mxu0 %v1324
        %v1392 = vpop.f32.mrf.mxu0
        %v1393 = vadd.f32 0.0, %v1392
        %1394 = vmatmul.f32.gmra.mxu0 %v1327
        %v1395 = vpop.f32.mrf.mxu0
        %v1396 = vadd.f32 0.0, %v1395
        %1397 = vmatmul.f32.gmra.mxu0 %v1330
        %v1398 = vpop.f32.mrf.mxu0
        %v1399 = vadd.f32 0.0, %v1398
        %1400 = vmatmul.f32.gmra.mxu0 %v1333
        %v1401 = vpop.f32.mrf.mxu0
        %v1402 = vadd.f32 0.0, %v1401
        %1403 = vmatmul.f32.gmra.mxu0 %v1336
        %v1404 = vpop.f32.mrf.mxu0
        %v1405 = vadd.f32 0.0, %v1404
        %1406 = vmatmul.f32.gmra.mxu0 %v1339
        %v1407 = vpop.f32.mrf.mxu0
        %v1408 = vadd.f32 0.0, %v1407
        %1409 = vmatmul.f32.gmra.mxu0 %v1342
        %v1410 = vpop.f32.mrf.mxu0
        %v1411 = vadd.f32 0.0, %v1410
        %1412 = vdwg.mxu0
        %1413 = vxpose.xlu0.b32.start [1/16] %v1366, 128
        %1414 = vxpose.xlu0.b32.cont [2/16] %v1369, 128
        %1415 = vxpose.xlu0.b32.cont [3/16] %v1372, 128
        %1416 = vxpose.xlu0.b32.cont [4/16] %v1375, 128
        %1417 = vxpose.xlu0.b32.cont [5/16] %v1378, 128
        %1418 = vxpose.xlu0.b32.cont [6/16] %v1381, 128
        %1419 = vxpose.xlu0.b32.cont [7/16] %v1384, 128
        %1420 = vxpose.xlu0.b32.cont [8/16] %v1387, 128
        %1421 = vxpose.xlu0.b32.cont [9/16] %v1390, 128
        %1422 = vxpose.xlu0.b32.cont [10/16] %v1393, 128
        %1423 = vxpose.xlu0.b32.cont [11/16] %v1396, 128
        %1424 = vxpose.xlu0.b32.cont [12/16] %v1399, 128
        %1425 = vxpose.xlu0.b32.cont [13/16] %v1402, 128
        %1426 = vxpose.xlu0.b32.cont [14/16] %v1405, 128
        %1427 = vxpose.xlu0.b32.cont [15/16] %v1408, 128
        %1428 = vxpose.xlu0.b32.end [16/16] %v1411, 128
        %v1429 = vpop.trf.xlu0
        %v1430 = vpop.trf.xlu0
        %v1431 = vpop.trf.xlu0
        %v1432 = vpop.trf.xlu0
        %v1433 = vpop.trf.xlu0
        %v1434 = vpop.trf.xlu0
        %v1435 = vpop.trf.xlu0
        %v1436 = vpop.trf.xlu0
        %v1437 = vpop.trf.xlu0
        %v1438 = vpop.trf.xlu0
        %v1439 = vpop.trf.xlu0
        %v1440 = vpop.trf.xlu0
        %v1441 = vpop.trf.xlu0
        %v1442 = vpop.trf.xlu0
        %v1443 = vpop.trf.xlu0
        %v1444 = vpop.trf.xlu0
        %v1445 = vld [vmem:[%s5] sm:$0xff]
        %1447 = vset.pattern.permute.xlu0 0
        %1448 = vperm.xlu0 %1447, %v1445
        %v1449 = vpop.permute.xlu0 %1448
        %v1451 = vadd.f32 %v1429, %v1449
        %1452 = vst [vmem:[%s309] sm:$0xff] %v1451
        %s1453 = sand.u32 %s186, 1
        %s1454 = scalar_lea.sflag [#allocation4], %s1453
        %s1455 = sand.u32 %s186, 1
        %s1456 = smul.addr %s1455, 8
        %s1457 = scalar_lea.vmem [#allocation3], %s1456
        // Predicated region
        $region45: #{tpu_custom_call.1} parent=43 // pred_check
          %p1458 = pneg %p196
        $region46: #{tpu_custom_call.1} parent=43 // pred_check_branch
          %1460 = sbr.rel (%p1458) target = $region48
        $region47: #{tpu_custom_call.1} parent=43 // pred_region
          %1462 = vsyncadd %s1454, 0
          %s1463 = smul.addr %s24, 2
          %s1464 = sadd.s32 %s25, %s1463
          %s1465 = smul.addr %s1464, 8
          %s1466 = scalar_lea.hbm %s6, %s1465
          %s1468 = sshll.u32 %s1457, 4
          %s1469 = int_to_ptr.vmem [resolvable:$true] %s1468
          %s1470 = sshll.u32 %s1466, 4
          %s1471 = int_to_ptr.hbm [resolvable:$true] %s1470
          %1473 = dma.vmem_to_hbm [thread:$0]  %s1469, 128, %s1471, %s1454
        $region48: #{tpu_custom_call.1} parent=43 // pred_fallthru
          _
      $region44: #{tpu_custom_call.1} parent=5 // pred_fallthru
        _
      %p1474 = scmp.le.s32.totalorder 2, %s15
      // Predicated region
      $region49: #{tpu_custom_call.1} parent=5 // pred_check
        %p1475 = pneg %p1474
      $region50: #{tpu_custom_call.1} parent=5 // pred_check_branch
        %1477 = sbr.rel (%p1475) target = $region52
      $region51: #{tpu_custom_call.1} parent=5 // pred_region
        %s1478 = ssub.s32 %s15, 2
        // Predicated region
        $region53: #{tpu_custom_call.1} parent=51 // pred_check
          %p1479 = pneg %p202
        $region54: #{tpu_custom_call.1} parent=51 // pred_check_branch
          %1481 = sbr.rel (%p1479) target = $region56
        $region55: #{tpu_custom_call.1} parent=51 // pred_region
          %s1482 = sand.u32 %s187, 1
          %s1483 = scalar_lea.sflag [#allocation4], %s1482
          %s1484 = sand.u32 %s187, 1
          %s1485 = smul.addr %s1484, 8
          %s1486 = scalar_lea.vmem [#allocation3], %s1485
          %1488 = dma.done %s1483, 128
        $region56: #{tpu_custom_call.1} parent=51 // pred_fallthru
          _
      $region52: #{tpu_custom_call.1} parent=5 // pred_fallthru
        _
    $region6: #{tpu_custom_call.1} parent=1 // loop_footer
      %s19 = sadd.s32 1, %s15
    $region7: #{tpu_custom_call.1} parent=1 // loop_footer_branch
      %14 = sbr.rel target = $region3
    $region8: #{tpu_custom_call.1} parent=1 // loop_exit
      _
    %1489 = vsyncpa [#allocation4], 1
    %s1490 = scalar_lea.sflag [#allocation4], 1
    %1491 = vsyncpa %s1490, 1

</llo_original>
